<compile_context>
chip_gen: v7x
topology: tpu7x:2x2x1
jax: 0.10.0
libtpu: 0.0.40
codegen_flags: <defaults>
</compile_context>

<pallas_src>
import jax
import jax.numpy as jnp
from jax.experimental import pallas as pl
from jax.experimental.pallas import tpu as pltpu


def _round_up(x: int, m: int) -> int:
    return -(-x // m) * m


def _choose_tile(hw: int, c: int, x_bytes: int, hidden: int, nsplit: int):
    """Pick a lane-aligned (multiple-of-128) spatial tile and padded HW.

    VMEM estimate covers the double-buffered x tile, the f32 Conv1 activation
    tile, the in-kernel bf16 copy of the x tile and the double-buffered bf16
    Conv1 weight; kept under ~22 MiB so the kernel fits a 32 MiB scoped VMEM
    limit on every generation (v7x included).
    """
    budget = 22 * 1024 * 1024

    def fits(t):
        return (2 * c * t * x_bytes      # x tile, double buffered
                + t * hidden * 4         # f32 Conv1 activations
                + c * t * 2              # bf16 copy of the x tile
                + 2 * hidden * c * 2     # bf16 Conv1 weight, double buffered
                ) <= budget

    cands = [t for t in (2048, 1024, 512, 256, 128) if fits(t)] or [128]

    # Prefer a tile that divides HW exactly (respecting the split): no padding.
    for t in cands:
        if hw % (t * nsplit) == 0:
            return t, hw

    # Otherwise zero-pad HW up to a multiple of nsplit * tile.
    per_split = -(-hw // nsplit)
    t = min(cands[0], _round_up(per_split, 128))
    return t, _round_up(hw, t * nsplit)


def image_da_forward_pallas(x, w1, w2, w3, b3, *, compute_dtype=jnp.bfloat16):
    """Forward pass of _ImageDA as one fused Pallas TPU kernel.

    x : (N, C, H, W)          NCHW input feature map (as in PyTorch)
    w1: (hidden, C)           Conv1 1x1 weight (bias-free)
    w2: (classSum, hidden)    Conv2 1x1 weight (bias-free)
    w3: (classSum, classSum)  Linear weight
    b3: (classSum,)           Linear bias
    returns (N, classSum)

    NOTE: hoisting the average pool before Conv2 and fusing Conv2 with the
    Linear layer is only valid because Conv1/Conv2 are bias-free 1x1 convs
    (true for _ImageDA; a future bias flag would break this fusion).
    """
    N, C, H, W = x.shape
    HW = H * W
    hidden, c_w1 = w1.shape
    cs = w2.shape[0]
    assert c_w1 == C and w2.shape[1] == hidden
    assert w3.shape == (cs, cs) and b3.shape == (cs,)

    # Native NCHW layout: reshape only (free), no transpose / no extra HBM pass.
    xr = x.reshape(N, C, HW)

    # For batch-1 inference split the spatial axis 2-way so both v7x
    # TensorCores get a "parallel" grid slice (no effect on v5e/v6e: 1 TC).
    nsplit = 2 if N == 1 else 1

    thw, hw_padded = _choose_tile(HW, C, x.dtype.itemsize, hidden, nsplit)
    if hw_padded != HW:
        # Exact: padded columns give ReLU(Conv1(0)) == 0, so they contribute
        # nothing to the pooled sum (which is divided by the true HW).
        xr = jnp.pad(xr, ((0, 0), (0, 0), (0, hw_padded - HW)))
    kt_per = hw_padded // (thw * nsplit)

    # Conv1 weight in its native (hidden, C) orientation, MXU compute dtype.
    w1c = w1.astype(compute_dtype)
    # Fused epilogue: Conv2 and the Linear layer are both linear maps, so they
    # collapse into one (cs, hidden) matrix; the 1/HW pool scale folds in too.
    wf = (w3.astype(jnp.float32) @ w2.astype(jnp.float32)) * (1.0 / float(HW))

    def kernel(x_ref, w1_ref, wf_ref, o_ref, acc_ref):
        k = pl.program_id(2)

        @pl.when(k == 0)
        def _init():
            acc_ref[...] = jnp.zeros_like(acc_ref)

        # Conv1 (1x1) on this spatial tile: (hidden, C) @ (C, thw).
        # Cast to the compute dtype inside the kernel (MXU-native bf16 path
        # with f32 accumulation; no extra wrapper-side HBM pass over x).
        xt = x_ref[0].astype(compute_dtype)
        h = jnp.dot(w1_ref[...], xt, preferred_element_type=jnp.float32)
        h = jnp.maximum(h, 0.0)                                # ReLU
        # Pooled (summed) over this tile's spatial positions (padded cols = 0).
        acc_ref[...] += jnp.sum(h, axis=1, keepdims=True)      # (hidden, 1)

        @pl.when(k == pl.num_programs(2) - 1)
        def _epilogue():
            # Fused Conv2 + Linear (+ 1/HW): (cs, hidden) @ (hidden, 1).
            out = jnp.dot(wf_ref[...], acc_ref[...],
                          preferred_element_type=jnp.float32)
            o_ref[0, 0] = out.astype(o_ref.dtype)

    # Note: the grid-invariant weights (w1c, wf) could be single-buffered with
    # pipeline_mode=pl.Buffered(1) to save a little VMEM on v7x; the tile
    # budget above already leaves headroom, so defaults are kept.
    out4 = pl.pallas_call(
        kernel,
        out_shape=jax.ShapeDtypeStruct((N, nsplit, cs, 1), jnp.float32),
        grid_spec=pltpu.PrefetchScalarGridSpec(
            num_scalar_prefetch=0,
            grid=(N, nsplit, kt_per),
            in_specs=[
                pl.BlockSpec((1, C, thw), lambda n, s, k: (n, 0, s * kt_per + k)),
                pl.BlockSpec((hidden, C), lambda n, s, k: (0, 0)),
                pl.BlockSpec((cs, hidden), lambda n, s, k: (0, 0)),
            ],
            out_specs=pl.BlockSpec((1, 1, cs, 1), lambda n, s, k: (n, s, 0, 0)),
            scratch_shapes=[pltpu.VMEM((hidden, 1), jnp.float32)],
        ),
        compiler_params=pltpu.CompilerParams(
            dimension_semantics=("parallel", "parallel", "arbitrary"),
            vmem_limit_bytes=32 * 1024 * 1024,
        ),
    )(xr, w1c, wf)

    # Combine the (linear) spatial-split partials and add the Linear bias.
    out = jnp.sum(out4[..., 0], axis=1) + b3[None, :]
    return out.astype(x.dtype)


def _image_da_ref(x, w1, w2, w3, b3):
    """Pure-JAX reference matching the PyTorch op order exactly."""
    N, C, H, W = x.shape
    xr = jnp.transpose(x.reshape(N, C, H * W), (0, 2, 1))     # (N, HW, C)
    h = jnp.maximum(jnp.einsum("nsc,oc->nso", xr, w1), 0.0)   # Conv1 + ReLU
    c2 = jnp.einsum("nso,po->nsp", h, w2)                     # Conv2
    pooled = jnp.mean(c2, axis=1)                             # AdaptiveAvgPool2d((1,1))
    return pooled @ w3.T + b3                                 # Linear


def image_da_forward(x, w1, w2, w3, b3):
    """Dispatcher: tiny feature maps are dominated by fixed pallas_call/grid
    overhead (and a K=C MXU contraction contributes nothing for tiny C), so
    route them to plain XLA; realistic maps use the fused Pallas kernel."""
    N, C, H, W = x.shape
    if C * H * W < 64 * 1024:
        return _image_da_ref(x, w1, w2, w3, b3)
    return image_da_forward_pallas(x, w1, w2, w3, b3)


if __name__ == "__main__":
    key = jax.random.PRNGKey(0)
    kx, k1, k2, k3, kb = jax.random.split(key, 5)

    N, dim, H, W = 2, 4, 16, 16
    class_sum = 10
    hidden = 512

    x = jax.random.normal(kx, (N, dim, H, W), dtype=jnp.float32)
    w1 = jax.random.normal(k1, (hidden, dim), dtype=jnp.float32) * 0.05
    w2 = jax.random.normal(k2, (class_sum, hidden), dtype=jnp.float32) * 0.05
    w3 = jax.random.normal(k3, (class_sum, class_sum), dtype=jnp.float32) * 0.05
    b3 = jax.random.normal(kb, (class_sum,), dtype=jnp.float32) * 0.05

    y_ref = _image_da_ref(x, w1, w2, w3, b3)

    # f32 compute path: must match the reference tightly.
    y32 = jax.block_until_ready(
        image_da_forward_pallas(x, w1, w2, w3, b3, compute_dtype=jnp.float32))
    assert y32.shape == (N, class_sum), (y32.shape, (N, class_sum))
    err32 = float(jnp.max(jnp.abs(y32 - y_ref)))
    assert err32 < 5e-4, f"f32 max abs err {err32}"

    # Default bf16 compute path (MXU-native), looser tolerance.
    ybf = jax.block_until_ready(image_da_forward_pallas(x, w1, w2, w3, b3))
    errbf = float(jnp.max(jnp.abs(ybf - y_ref)))
    assert errbf < 1e-2, f"bf16 max abs err {errbf}"

    # Batch=1 exercises the 2-way spatial split (keeps both v7x TCs busy).
    y1 = jax.block_until_ready(
        image_da_forward_pallas(x[:1], w1, w2, w3, b3, compute_dtype=jnp.float32))
    err1 = float(jnp.max(jnp.abs(y1 - y_ref[:1])))
    assert err1 < 5e-4, f"split-path max abs err {err1}"

    print("KERNEL_OK")
</pallas_src>

<mosaic_0001>
module attributes {stable_mosaic.version = 11 : i64} {
  func.func @kernel(%arg0: i32, %arg1: i32, %arg2: i32, %arg3: memref<1x4x256xf32, #tpu.memory_space<vmem>>, %arg4: memref<512x4xf32, #tpu.memory_space<vmem>>, %arg5: memref<10x512xf32, #tpu.memory_space<vmem>>, %arg6: memref<1x1x10x1xf32, #tpu.memory_space<vmem>>, %arg7: memref<512x1xf32, #tpu.memory_space<vmem>>) attributes {dimension_semantics = [#tpu.dimension_semantics<parallel>, #tpu.dimension_semantics<parallel>, #tpu.dimension_semantics<arbitrary>], iteration_bounds = array<i64: 2, 1, 1>, scalar_prefetch = 0 : i64, scratch_operands = 1 : i64, tpu.core_type = #tpu.core_type<tc>, window_params = [{transform_indices = @transform_0, window_bounds = array<i64: 1, 4, 256>}, {pipeline_mode = #tpu.pipeline_mode<synchronous>, transform_indices = @transform_1, window_bounds = array<i64: 512, 4>}, {pipeline_mode = #tpu.pipeline_mode<synchronous>, transform_indices = @transform_2, window_bounds = array<i64: 10, 512>}, {transform_indices = @transform_3, window_bounds = array<i64: 1, 1, 10, 1>}]} {
    %c0_i32 = arith.constant 0 : i32
    %0 = arith.cmpi eq, %arg2, %c0_i32 : i32
    %1 = arith.extui %0 : i1 to i32
    %c0_i32_0 = arith.constant 0 : i32
    %2 = arith.cmpi ne, %1, %c0_i32_0 : i32
    scf.if %2 {
      %cst_13 = arith.constant 0.000000e+00 : f32
      %17 = vector.broadcast %cst_13 : f32 to vector<512x1xf32>
      %c0_14 = arith.constant 0 : index
      %c0_15 = arith.constant 0 : index
      %18 = vector.load %arg7[%c0_14, %c0_15] : memref<512x1xf32, #tpu.memory_space<vmem>>, vector<512x1xf32>
      tpu.vector_store %arg7[%c0_14, %c0_15], %17 {strides = array<i32>} : memref<512x1xf32, #tpu.memory_space<vmem>>, vector<512x1xf32>,
    } else {
    }
    %c0 = arith.constant 0 : index
    %c0_1 = arith.constant 0 : index
    %c0_2 = arith.constant 0 : index
    %3 = vector.load %arg3[%c0, %c0_1, %c0_2] : memref<1x4x256xf32, #tpu.memory_space<vmem>>, vector<1x4x256xf32>
    %4 = vector.shape_cast %3 : vector<1x4x256xf32> to vector<4x256xf32>
    %c0_3 = arith.constant 0 : index
    %c0_4 = arith.constant 0 : index
    %5 = vector.load %arg4[%c0_3, %c0_4] : memref<512x4xf32, #tpu.memory_space<vmem>>, vector<512x4xf32>
    %cst = arith.constant dense<0.000000e+00> : vector<512x256xf32>
    %6 = tpu.matmul %5, %4, %cst {dimension_numbers = #tpu.dot_dimension_numbers<[1], [0], [0], [1], [0, 0, 1, 1], [], []>} : vector<512x4xf32>, vector<4x256xf32>, vector<512x256xf32> -> vector<512x256xf32>
    %cst_5 = arith.constant 0.000000e+00 : f32
    %7 = vector.broadcast %cst_5 : f32 to vector<512x256xf32>
    %8 = arith.maximumf %6, %7 : vector<512x256xf32>
    %c0_6 = arith.constant 0 : index
    %c0_7 = arith.constant 0 : index
    %9 = vector.load %arg7[%c0_6, %c0_7] : memref<512x1xf32, #tpu.memory_space<vmem>>, vector<512x1xf32>
    %cst_8 = arith.constant dense<0.000000e+00> : vector<512xf32>
    %10 = vector.multi_reduction <add>, %8, %cst_8 [1] : vector<512x256xf32> to vector<512xf32>
    %11 = vector.shape_cast %10 : vector<512xf32> to vector<512x1xf32>
    %12 = arith.addf %9, %11 : vector<512x1xf32>
    %c0_9 = arith.constant 0 : index
    %c0_10 = arith.constant 0 : index
    %13 = vector.load %arg7[%c0_9, %c0_10] : memref<512x1xf32, #tpu.memory_space<vmem>>, vector<512x1xf32>
    tpu.vector_store %arg7[%c0_9, %c0_10], %12 {strides = array<i32>} : memref<512x1xf32, #tpu.memory_space<vmem>>, vector<512x1xf32>,
    %c0_i32_11 = arith.constant 0 : i32
    %14 = arith.cmpi eq, %arg2, %c0_i32_11 : i32
    %15 = arith.extui %14 : i1 to i32
    %c0_i32_12 = arith.constant 0 : i32
    %16 = arith.cmpi ne, %15, %c0_i32_12 : i32
    scf.if %16 {
      %c0_13 = arith.constant 0 : index
      %c0_14 = arith.constant 0 : index
      %17 = vector.load %arg5[%c0_13, %c0_14] : memref<10x512xf32, #tpu.memory_space<vmem>>, vector<10x512xf32>
      %c0_15 = arith.constant 0 : index
      %c0_16 = arith.constant 0 : index
      %18 = vector.load %arg7[%c0_15, %c0_16] : memref<512x1xf32, #tpu.memory_space<vmem>>, vector<512x1xf32>
      %cst_17 = arith.constant dense<0.000000e+00> : vector<10x1xf32>
      %19 = tpu.matmul %17, %18, %cst_17 {dimension_numbers = #tpu.dot_dimension_numbers<[1], [0], [0], [1], [0, 0, 1, 1], [], []>} : vector<10x512xf32>, vector<512x1xf32>, vector<10x1xf32> -> vector<10x1xf32>
      %c0_18 = arith.constant 0 : index
      %c0_19 = arith.constant 0 : index
      %c0_20 = arith.constant 0 : index
      %c0_21 = arith.constant 0 : index
      %20 = vector.load %arg6[%c0_18, %c0_19, %c0_20, %c0_21] : memref<1x1x10x1xf32, #tpu.memory_space<vmem>>, vector<1x1x10x1xf32>
      %21 = vector.shape_cast %20 : vector<1x1x10x1xf32> to vector<10x1xf32>
      %22 = vector.shape_cast %19 : vector<10x1xf32> to vector<1x1x10x1xf32>
      tpu.vector_store %arg6[%c0_18, %c0_19, %c0_20, %c0_21], %22 {strides = array<i32>} : memref<1x1x10x1xf32, #tpu.memory_space<vmem>>, vector<1x1x10x1xf32>,
    } else {
    }
    return
  }
  func.func @transform_0(%arg0: i32, %arg1: i32, %arg2: i32) -> (i32, i32, i32) {
    %c1_i32 = arith.constant 1 : i32
    %0 = arith.muli %arg1, %c1_i32 : i32
    %1 = arith.addi %0, %arg2 : i32
    %c0_i32 = arith.constant 0 : i32
    %c0_i32_0 = arith.constant 0 : i32
    return %arg0, %c0_i32, %1 : i32, i32, i32
  }
  func.func @transform_1(%arg0: i32, %arg1: i32, %arg2: i32) -> (i32, i32) {
    %c0_i32 = arith.constant 0 : i32
    %c0_i32_0 = arith.constant 0 : i32
    %c0_i32_1 = arith.constant 0 : i32
    return %c0_i32, %c0_i32_0 : i32, i32
  }
  func.func @transform_2(%arg0: i32, %arg1: i32, %arg2: i32) -> (i32, i32) {
    %c0_i32 = arith.constant 0 : i32
    %c0_i32_0 = arith.constant 0 : i32
    %c0_i32_1 = arith.constant 0 : i32
    return %c0_i32, %c0_i32_0 : i32, i32
  }
  func.func @transform_3(%arg0: i32, %arg1: i32, %arg2: i32) -> (i32, i32, i32, i32) {
    %c0_i32 = arith.constant 0 : i32
    %c0_i32_0 = arith.constant 0 : i32
    %c0_i32_1 = arith.constant 0 : i32
    return %arg0, %arg1, %c0_i32, %c0_i32_0 : i32, i32, i32, i32
  }
}

</mosaic_0001>

<llo_original>
// kernel: tpu_custom_call.1
$region0: #{tpu_custom_call.1}
  #allocation0 [shape = 'u32[]', space=smem, size = 0x4, offset = 0x4, fixed_abs, tag = 'smem constant byte address 0x4 - core index']
  #allocation1 [shape = 'u32[144,128]{1,0:T(1,128)}', space=vmem, size = 0x12000, scoped, tag = 'internal scratch']
  #allocation2 [shape = 'f32[512,1]{1,0:T(8,128)}', space=vmem, size = 0x40000, scoped, tag = 'scratch operand']
  %s0 = inlined_call_operand.vmem [shape: f32[2,4,256], index: 0, kind: input, shape index: {}]
  %s1 = inlined_call_operand.vmem [shape: f32[512,4], index: 1, kind: input, shape index: {}]
  %s2 = inlined_call_operand.vmem [shape: f32[10,512], index: 2, kind: input, shape index: {}]
  %s3 = inlined_call_operand.vmem [shape: f32[2,1,10,1], index: 3, kind: output, shape index: {}]
  %s4 = sld [smem:[#allocation0]]
  $region53: #{tpu_custom_call.1} parent=0
    _
  %s6 = ssub.s32 1, %s4
  %s7 = scalar_select 0, %s6, %s4
  loop: start=0, step=1, limit=4
  $region2: #{tpu_custom_call.1} parent=0 // loop_pre_header
    _
  $region3: #{tpu_custom_call.1} parent=0 // loop_header
    %s9 = sphi 0, %s13
    %p10 = scmp.ge.s32.totalorder %s9, 4
    %s16 = sphi 0, %s35
    %s17 = sphi 0, %s31
    %s18 = sphi 0, %s27
    %s19 = sphi 0, %s16
    %s20 = sphi 0, %s17
    %s21 = sphi 0, %s18
    %s22 = sphi 0, %s19
    %s23 = sphi 0, %s20
    %s24 = sphi 0, %s21
    %s42 = sphi 0, %s44
    %s45 = sphi 0, %s42
    %s46 = sphi 0, %s45
    %s62 = sphi 0, %s46
    %s66 = sphi 0, %s66
    %s68 = sphi 0, %s66
    %s69 = sphi 0, %s68
    %s83 = sphi 0, %s69
    %s87 = sphi 0, %s87
    %s89 = sphi 0, %s87
    %s90 = sphi 0, %s89
    %s104 = sphi 0, %s90
    %s112 = sphi 0, %s114
    %s115 = sphi 0, %s112
    %s116 = sphi 0, %s115
    %s132 = sphi 0, %s116
  $region4: #{tpu_custom_call.1} parent=0 // loop_header_branch
    %12 = sbr.rel (%p10) target = $region8
  $region5: #{tpu_custom_call.1} parent=0 // loop_body
    %s14 = ssub.s32 %s9, 1
    %s15 = ssub.s32 %s9, 2
    %s25 = sadd.s32 1, %s18
    %p26 = scmp.ge.s32.totalorder %s25, 1
    %s27 = scalar_select %p26, 0, %s25
    %s28 = sadd.s32 1, %s17
    %s29 = scalar_select %p26, %s28, %s17
    %p30 = scmp.ge.s32.totalorder %s29, 1
    %s31 = scalar_select %p30, 0, %s29
    %s32 = sadd.s32 1, %s16
    %s33 = scalar_select %p30, %s32, %s16
    %p34 = scmp.ge.s32.totalorder %s33, 2
    %s35 = scalar_select %p34, 0, %s33
    %s36 = sadd.s32 %s17, %s18
    %s37 = sadd.s32 %s31, %s27
    %s38 = ssub.s32 %s16, %s35
    %s39 = ssub.s32 %s36, %s37
    %s40 = sor.u32 %s38, %s39
    %p41 = scmp.eq.s32.totalorder %s40, 0
    %s43 = sadd.s32 %s42, 1
    %s44 = scalar_select %p41, %s42, %s43
    %p47 = pneg %p41
    %p48 = scmp.eq.s32.totalorder %s9, 1
    %p49 = por %p47, %p48
    %p50 = scmp.ne.s32.totalorder %s42, %s45
    %p51 = scmp.eq.s32.totalorder %s9, 0
    %p52 = por %p50, %p51
    %p53 = scmp.ne.s32.totalorder %s42, %s45
    %p54 = scmp.eq.s32.totalorder %s14, 1
    %p55 = por %p53, %p54
    %p56 = scmp.ne.s32.totalorder %s45, %s46
    %p57 = scmp.eq.s32.totalorder %s14, 0
    %p58 = por %p56, %p57
    %p59 = scmp.ne.s32.totalorder %s45, %s46
    %p60 = scmp.eq.s32.totalorder %s15, 1
    %p61 = por %p59, %p60
    %p63 = scmp.ne.s32.totalorder %s46, %s62
    %p64 = scmp.eq.s32.totalorder %s15, 0
    %p65 = por %p63, %p64
    %s67 = sadd.s32 %s66, 1
    %p70 = scmp.eq.s32.totalorder %s9, 1
    %p71 = scmp.ne.s32.totalorder %s66, %s68
    %p72 = scmp.eq.s32.totalorder %s9, 0
    %p73 = por %p71, %p72
    %p74 = scmp.ne.s32.totalorder %s66, %s68
    %p75 = scmp.eq.s32.totalorder %s14, 1
    %p76 = por %p74, %p75
    %p77 = scmp.ne.s32.totalorder %s68, %s69
    %p78 = scmp.eq.s32.totalorder %s14, 0
    %p79 = por %p77, %p78
    %p80 = scmp.ne.s32.totalorder %s68, %s69
    %p81 = scmp.eq.s32.totalorder %s15, 1
    %p82 = por %p80, %p81
    %p84 = scmp.ne.s32.totalorder %s69, %s83
    %p85 = scmp.eq.s32.totalorder %s15, 0
    %p86 = por %p84, %p85
    %s88 = sadd.s32 %s87, 1
    %p91 = scmp.eq.s32.totalorder %s9, 1
    %p92 = scmp.ne.s32.totalorder %s87, %s89
    %p93 = scmp.eq.s32.totalorder %s9, 0
    %p94 = por %p92, %p93
    %p95 = scmp.ne.s32.totalorder %s87, %s89
    %p96 = scmp.eq.s32.totalorder %s14, 1
    %p97 = por %p95, %p96
    %p98 = scmp.ne.s32.totalorder %s89, %s90
    %p99 = scmp.eq.s32.totalorder %s14, 0
    %p100 = por %p98, %p99
    %p101 = scmp.ne.s32.totalorder %s89, %s90
    %p102 = scmp.eq.s32.totalorder %s15, 1
    %p103 = por %p101, %p102
    %p105 = scmp.ne.s32.totalorder %s90, %s104
    %p106 = scmp.eq.s32.totalorder %s15, 0
    %p107 = por %p105, %p106
    %s108 = ssub.s32 %s16, %s35
    %s109 = ssub.s32 %s17, %s31
    %s110 = sor.u32 %s108, %s109
    %p111 = scmp.eq.s32.totalorder %s110, 0
    %s113 = sadd.s32 %s112, 1
    %s114 = scalar_select %p111, %s112, %s113
    %p117 = pneg %p111
    %p118 = scmp.eq.s32.totalorder %s9, 1
    %p119 = por %p117, %p118
    %p120 = scmp.ne.s32.totalorder %s112, %s115
    %p121 = scmp.eq.s32.totalorder %s9, 0
    %p122 = por %p120, %p121
    %p123 = scmp.ne.s32.totalorder %s112, %s115
    %p124 = scmp.eq.s32.totalorder %s14, 1
    %p125 = por %p123, %p124
    %p126 = scmp.ne.s32.totalorder %s115, %s116
    %p127 = scmp.eq.s32.totalorder %s14, 0
    %p128 = por %p126, %p127
    %p129 = scmp.ne.s32.totalorder %s115, %s116
    %p130 = scmp.eq.s32.totalorder %s15, 1
    %p131 = por %p129, %p130
    %p133 = scmp.ne.s32.totalorder %s116, %s132
    %p134 = scmp.eq.s32.totalorder %s15, 0
    %p135 = por %p133, %p134
    %p136 = scmp.le.s32.totalorder 1, %s9
    %p137 = scmp.lt.s32.totalorder %s9, 3
    %p138 = pnand %p136, %p137
    %p139 = pneg %p138
    // Predicated region
    $region9: #{tpu_custom_call.1} parent=5 // pred_check
      _
    $region10: #{tpu_custom_call.1} parent=5 // pred_check_branch
      %141 = sbr.rel (%p138) target = $region12
    $region11: #{tpu_custom_call.1} parent=5 // pred_region
      %s142 = ssub.s32 %s9, 1
      // Predicated region
      $region13: #{tpu_custom_call.1} parent=11 // pred_check
        %p143 = pneg %p79
      $region14: #{tpu_custom_call.1} parent=11 // pred_check_branch
        %145 = sbr.rel (%p143) target = $region16
      $region15: #{tpu_custom_call.1} parent=11 // pred_region
        _
      $region16: #{tpu_custom_call.1} parent=11 // pred_fallthru
        _
      // Predicated region
      $region17: #{tpu_custom_call.1} parent=11 // pred_check
        %p146 = pneg %p100
      $region18: #{tpu_custom_call.1} parent=11 // pred_check_branch
        %148 = sbr.rel (%p146) target = $region20
      $region19: #{tpu_custom_call.1} parent=11 // pred_region
        _
      $region20: #{tpu_custom_call.1} parent=11 // pred_fallthru
        _
    $region12: #{tpu_custom_call.1} parent=5 // pred_fallthru
      _
    %p149 = scmp.lt.s32.totalorder %s9, 2
    // Predicated region
    $region21: #{tpu_custom_call.1} parent=5 // pred_check
      %p150 = pneg %p149
    $region22: #{tpu_custom_call.1} parent=5 // pred_check_branch
      %152 = sbr.rel (%p150) target = $region24
    $region23: #{tpu_custom_call.1} parent=5 // pred_region
      // Predicated region
      $region25: #{tpu_custom_call.1} parent=23 // pred_check
        %p153 = pneg %p52
      $region26: #{tpu_custom_call.1} parent=23 // pred_check_branch
        %155 = sbr.rel (%p153) target = $region28
      $region27: #{tpu_custom_call.1} parent=23 // pred_region
        %s156 = sadd.s32 %s17, %s18
        %s157 = smul.u32 2, %s156
        %p158 = scmp.lt.s32.totalorder %s16, 1
        %s159 = scalar_select %p158, %s16, 1
        %p160 = scmp.lt.s32.totalorder %s157, 1
        %s161 = scalar_select %p160, %s157, 1
        %s162 = smul.addr %s159, 2
        %s163 = sadd.s32 %s161, %s162
        %s164 = smul.addr %s163, 4
        %s165 = scalar_lea.vmem %s0, %s164
        %s166 = sadd.s32 %s17, %s18
        %s167 = smul.u32 2, %s166
      $region28: #{tpu_custom_call.1} parent=23 // pred_fallthru
        _
    $region24: #{tpu_custom_call.1} parent=5 // pred_fallthru
      _
    %p168 = scmp.le.s32.totalorder 1, %s9
    %p169 = scmp.lt.s32.totalorder %s9, 3
    %p170 = pnand %p168, %p169
    %p171 = pneg %p170
    // Predicated region
    $region29: #{tpu_custom_call.1} parent=5 // pred_check
      _
    $region30: #{tpu_custom_call.1} parent=5 // pred_check_branch
      %173 = sbr.rel (%p170) target = $region32
    $region31: #{tpu_custom_call.1} parent=5 // pred_region
      %s174 = ssub.s32 %s9, 1
      %s175 = sadd.s32 %s20, %s21
      %s176 = smul.u32 2, %s175
      %p177 = scmp.lt.s32.totalorder %s19, 1
      %s178 = scalar_select %p177, %s19, 1
      %p179 = scmp.lt.s32.totalorder %s176, 1
      %s180 = scalar_select %p179, %s176, 1
      %s181 = smul.addr %s178, 2
      %s182 = sadd.s32 %s180, %s181
      %s183 = smul.addr %s182, 4
      %s184 = scalar_lea.vmem %s0, %s183
      %p185 = pneg %p58
      %p186 = pneg %p55
      %p187 = pneg %p79
      %p188 = pneg %p76
      %p189 = pneg %p100
      %p190 = pneg %p97
      %p191 = pneg %p128
      %p192 = pneg %p125
      %p193 = scmp.lt.s32.totalorder %s19, 1
      %s194 = scalar_select %p193, %s19, 1
      %p195 = scmp.lt.s32.totalorder %s20, 0
      %s196 = scalar_select %p195, %s20, 0
      %s197 = smul.addr %s196, 2
      %s198 = smul.addr %s194, 2
      %s199 = sadd.s32 %s197, %s198
      %s200 = smul.addr %s199, 8
      %s201 = scalar_lea.vmem %s3, %s200
      %s202 = sadd.s32 %s20, %s21
      %s203 = smul.u32 2, %s202
      %p204 = scmp.lt.s32.totalorder %s19, 1
      %s205 = scalar_select %p204, %s19, 1
      %p206 = scmp.lt.s32.totalorder %s203, 1
      %s207 = scalar_select %p206, %s203, 1
      %s208 = smul.addr %s205, 2
      %s209 = sadd.s32 %s207, %s208
      %s210 = smul.addr %s209, 4
      %s211 = scalar_lea.vmem %s0, %s210
      %s212 = sadd.s32 %s20, %s21
      %s213 = smul.u32 2, %s212
      %p214 = scmp.lt.s32.totalorder %s19, 1
      %s215 = scalar_select %p214, %s19, 1
      %p216 = scmp.lt.s32.totalorder %s20, 0
      %s217 = scalar_select %p216, %s20, 0
      %s218 = smul.addr %s217, 2
      %s219 = smul.addr %s215, 2
      %s220 = sadd.s32 %s218, %s219
      %s221 = smul.addr %s220, 8
      %s222 = scalar_lea.vmem %s3, %s221
      %p223 = scmp.eq.s32.totalorder %s21, 0
      // Predicated region
      $region33: #{tpu_custom_call.1} parent=31 // pred_check
        %p224 = pneg %p223
      $region34: #{tpu_custom_call.1} parent=31 // pred_check_branch
        %226 = sbr.rel (%p224) target = $region36
      $region35: #{tpu_custom_call.1} parent=31 // pred_region
        %vm227 = vcmask 7168
        %228 = vst.msk [vmem:[#allocation2] sm:$0xff] %vm227, 0.0
        %229 = vst.msk [vmem:[#allocation2 + $0x8] sm:$0xff] %vm227, 0.0
        %230 = vst.msk [vmem:[#allocation2 + $0x10] sm:$0xff] %vm227, 0.0
        %231 = vst.msk [vmem:[#allocation2 + $0x18] sm:$0xff] %vm227, 0.0
        %232 = vst.msk [vmem:[#allocation2 + $0x20] sm:$0xff] %vm227, 0.0
        %233 = vst.msk [vmem:[#allocation2 + $0x28] sm:$0xff] %vm227, 0.0
        %234 = vst.msk [vmem:[#allocation2 + $0x30] sm:$0xff] %vm227, 0.0
        %235 = vst.msk [vmem:[#allocation2 + $0x38] sm:$0xff] %vm227, 0.0
        %236 = vst.msk [vmem:[#allocation2 + $0x40] sm:$0xff] %vm227, 0.0
        %237 = vst.msk [vmem:[#allocation2 + $0x48] sm:$0xff] %vm227, 0.0
        %238 = vst.msk [vmem:[#allocation2 + $0x50] sm:$0xff] %vm227, 0.0
        %239 = vst.msk [vmem:[#allocation2 + $0x58] sm:$0xff] %vm227, 0.0
        %240 = vst.msk [vmem:[#allocation2 + $0x60] sm:$0xff] %vm227, 0.0
        %241 = vst.msk [vmem:[#allocation2 + $0x68] sm:$0xff] %vm227, 0.0
        %242 = vst.msk [vmem:[#allocation2 + $0x70] sm:$0xff] %vm227, 0.0
        %243 = vst.msk [vmem:[#allocation2 + $0x78] sm:$0xff] %vm227, 0.0
        %244 = vst.msk [vmem:[#allocation2 + $0x80] sm:$0xff] %vm227, 0.0
        %245 = vst.msk [vmem:[#allocation2 + $0x88] sm:$0xff] %vm227, 0.0
        %246 = vst.msk [vmem:[#allocation2 + $0x90] sm:$0xff] %vm227, 0.0
        %247 = vst.msk [vmem:[#allocation2 + $0x98] sm:$0xff] %vm227, 0.0
        %248 = vst.msk [vmem:[#allocation2 + $0xa0] sm:$0xff] %vm227, 0.0
        %249 = vst.msk [vmem:[#allocation2 + $0xa8] sm:$0xff] %vm227, 0.0
        %250 = vst.msk [vmem:[#allocation2 + $0xb0] sm:$0xff] %vm227, 0.0
        %251 = vst.msk [vmem:[#allocation2 + $0xb8] sm:$0xff] %vm227, 0.0
        %252 = vst.msk [vmem:[#allocation2 + $0xc0] sm:$0xff] %vm227, 0.0
        %253 = vst.msk [vmem:[#allocation2 + $0xc8] sm:$0xff] %vm227, 0.0
        %254 = vst.msk [vmem:[#allocation2 + $0xd0] sm:$0xff] %vm227, 0.0
        %255 = vst.msk [vmem:[#allocation2 + $0xd8] sm:$0xff] %vm227, 0.0
        %256 = vst.msk [vmem:[#allocation2 + $0xe0] sm:$0xff] %vm227, 0.0
        %257 = vst.msk [vmem:[#allocation2 + $0xe8] sm:$0xff] %vm227, 0.0
        %258 = vst.msk [vmem:[#allocation2 + $0xf0] sm:$0xff] %vm227, 0.0
        %259 = vst.msk [vmem:[#allocation2 + $0xf8] sm:$0xff] %vm227, 0.0
        %260 = vst.msk [vmem:[#allocation2 + $0x100] sm:$0xff] %vm227, 0.0
        %261 = vst.msk [vmem:[#allocation2 + $0x108] sm:$0xff] %vm227, 0.0
        %262 = vst.msk [vmem:[#allocation2 + $0x110] sm:$0xff] %vm227, 0.0
        %263 = vst.msk [vmem:[#allocation2 + $0x118] sm:$0xff] %vm227, 0.0
        %264 = vst.msk [vmem:[#allocation2 + $0x120] sm:$0xff] %vm227, 0.0
        %265 = vst.msk [vmem:[#allocation2 + $0x128] sm:$0xff] %vm227, 0.0
        %266 = vst.msk [vmem:[#allocation2 + $0x130] sm:$0xff] %vm227, 0.0
        %267 = vst.msk [vmem:[#allocation2 + $0x138] sm:$0xff] %vm227, 0.0
        %268 = vst.msk [vmem:[#allocation2 + $0x140] sm:$0xff] %vm227, 0.0
        %269 = vst.msk [vmem:[#allocation2 + $0x148] sm:$0xff] %vm227, 0.0
        %270 = vst.msk [vmem:[#allocation2 + $0x150] sm:$0xff] %vm227, 0.0
        %271 = vst.msk [vmem:[#allocation2 + $0x158] sm:$0xff] %vm227, 0.0
        %272 = vst.msk [vmem:[#allocation2 + $0x160] sm:$0xff] %vm227, 0.0
        %273 = vst.msk [vmem:[#allocation2 + $0x168] sm:$0xff] %vm227, 0.0
        %274 = vst.msk [vmem:[#allocation2 + $0x170] sm:$0xff] %vm227, 0.0
        %275 = vst.msk [vmem:[#allocation2 + $0x178] sm:$0xff] %vm227, 0.0
        %276 = vst.msk [vmem:[#allocation2 + $0x180] sm:$0xff] %vm227, 0.0
        %277 = vst.msk [vmem:[#allocation2 + $0x188] sm:$0xff] %vm227, 0.0
        %278 = vst.msk [vmem:[#allocation2 + $0x190] sm:$0xff] %vm227, 0.0
        %279 = vst.msk [vmem:[#allocation2 + $0x198] sm:$0xff] %vm227, 0.0
        %280 = vst.msk [vmem:[#allocation2 + $0x1a0] sm:$0xff] %vm227, 0.0
        %281 = vst.msk [vmem:[#allocation2 + $0x1a8] sm:$0xff] %vm227, 0.0
        %282 = vst.msk [vmem:[#allocation2 + $0x1b0] sm:$0xff] %vm227, 0.0
        %283 = vst.msk [vmem:[#allocation2 + $0x1b8] sm:$0xff] %vm227, 0.0
        %284 = vst.msk [vmem:[#allocation2 + $0x1c0] sm:$0xff] %vm227, 0.0
        %285 = vst.msk [vmem:[#allocation2 + $0x1c8] sm:$0xff] %vm227, 0.0
        %286 = vst.msk [vmem:[#allocation2 + $0x1d0] sm:$0xff] %vm227, 0.0
        %287 = vst.msk [vmem:[#allocation2 + $0x1d8] sm:$0xff] %vm227, 0.0
        %288 = vst.msk [vmem:[#allocation2 + $0x1e0] sm:$0xff] %vm227, 0.0
        %289 = vst.msk [vmem:[#allocation2 + $0x1e8] sm:$0xff] %vm227, 0.0
        %290 = vst.msk [vmem:[#allocation2 + $0x1f0] sm:$0xff] %vm227, 0.0
        %291 = vst.msk [vmem:[#allocation2 + $0x1f8] sm:$0xff] %vm227, 0.0
      $region36: #{tpu_custom_call.1} parent=31 // pred_fallthru
        _
      %v292 = vld [vmem:[%s211] sm:$0xff]
      %v293 = vld [vmem:[%s1] sm:$0xff]
      %v294 = vld [vmem:[%s1 + $0x8] sm:$0xff]
      %v295 = vld [vmem:[%s1 + $0x10] sm:$0xff]
      %v296 = vld [vmem:[%s1 + $0x18] sm:$0xff]
      %v297 = vld [vmem:[%s1 + $0x20] sm:$0xff]
      %v298 = vld [vmem:[%s1 + $0x28] sm:$0xff]
      %v299 = vld [vmem:[%s1 + $0x30] sm:$0xff]
      %v300 = vld [vmem:[%s1 + $0x38] sm:$0xff]
      %v301 = vld [vmem:[%s1 + $0x40] sm:$0xff]
      %v302 = vld [vmem:[%s1 + $0x48] sm:$0xff]
      %v303 = vld [vmem:[%s1 + $0x50] sm:$0xff]
      %v304 = vld [vmem:[%s1 + $0x58] sm:$0xff]
      %v305 = vld [vmem:[%s1 + $0x60] sm:$0xff]
      %v306 = vld [vmem:[%s1 + $0x68] sm:$0xff]
      %v307 = vld [vmem:[%s1 + $0x70] sm:$0xff]
      %v308 = vld [vmem:[%s1 + $0x78] sm:$0xff]
      %v309 = vld [vmem:[%s1 + $0x80] sm:$0xff]
      %v310 = vld [vmem:[%s1 + $0x88] sm:$0xff]
      %v311 = vld [vmem:[%s1 + $0x90] sm:$0xff]
      %v312 = vld [vmem:[%s1 + $0x98] sm:$0xff]
      %v313 = vld [vmem:[%s1 + $0xa0] sm:$0xff]
      %v314 = vld [vmem:[%s1 + $0xa8] sm:$0xff]
      %v315 = vld [vmem:[%s1 + $0xb0] sm:$0xff]
      %v316 = vld [vmem:[%s1 + $0xb8] sm:$0xff]
      %v317 = vld [vmem:[%s1 + $0xc0] sm:$0xff]
      %v318 = vld [vmem:[%s1 + $0xc8] sm:$0xff]
      %v319 = vld [vmem:[%s1 + $0xd0] sm:$0xff]
      %v320 = vld [vmem:[%s1 + $0xd8] sm:$0xff]
      %v321 = vld [vmem:[%s1 + $0xe0] sm:$0xff]
      %v322 = vld [vmem:[%s1 + $0xe8] sm:$0xff]
      %v323 = vld [vmem:[%s1 + $0xf0] sm:$0xff]
      %v324 = vld [vmem:[%s1 + $0xf8] sm:$0xff]
      %v325 = vld [vmem:[%s1 + $0x100] sm:$0xff]
      %v326 = vld [vmem:[%s1 + $0x108] sm:$0xff]
      %v327 = vld [vmem:[%s1 + $0x110] sm:$0xff]
      %v328 = vld [vmem:[%s1 + $0x118] sm:$0xff]
      %v329 = vld [vmem:[%s1 + $0x120] sm:$0xff]
      %v330 = vld [vmem:[%s1 + $0x128] sm:$0xff]
      %v331 = vld [vmem:[%s1 + $0x130] sm:$0xff]
      %v332 = vld [vmem:[%s1 + $0x138] sm:$0xff]
      %v333 = vld [vmem:[%s1 + $0x140] sm:$0xff]
      %v334 = vld [vmem:[%s1 + $0x148] sm:$0xff]
      %v335 = vld [vmem:[%s1 + $0x150] sm:$0xff]
      %v336 = vld [vmem:[%s1 + $0x158] sm:$0xff]
      %v337 = vld [vmem:[%s1 + $0x160] sm:$0xff]
      %v338 = vld [vmem:[%s1 + $0x168] sm:$0xff]
      %v339 = vld [vmem:[%s1 + $0x170] sm:$0xff]
      %v340 = vld [vmem:[%s1 + $0x178] sm:$0xff]
      %v341 = vld [vmem:[%s1 + $0x180] sm:$0xff]
      %v342 = vld [vmem:[%s1 + $0x188] sm:$0xff]
      %v343 = vld [vmem:[%s1 + $0x190] sm:$0xff]
      %v344 = vld [vmem:[%s1 + $0x198] sm:$0xff]
      %v345 = vld [vmem:[%s1 + $0x1a0] sm:$0xff]
      %v346 = vld [vmem:[%s1 + $0x1a8] sm:$0xff]
      %v347 = vld [vmem:[%s1 + $0x1b0] sm:$0xff]
      %v348 = vld [vmem:[%s1 + $0x1b8] sm:$0xff]
      %v349 = vld [vmem:[%s1 + $0x1c0] sm:$0xff]
      %v350 = vld [vmem:[%s1 + $0x1c8] sm:$0xff]
      %v351 = vld [vmem:[%s1 + $0x1d0] sm:$0xff]
      %v352 = vld [vmem:[%s1 + $0x1d8] sm:$0xff]
      %v353 = vld [vmem:[%s1 + $0x1e0] sm:$0xff]
      %v354 = vld [vmem:[%s1 + $0x1e8] sm:$0xff]
      %v355 = vld [vmem:[%s1 + $0x1f0] sm:$0xff]
      %v356 = vld [vmem:[%s1 + $0x1f8] sm:$0xff]
      %v358 = vcombine.high %v292, %v292
      %vm359 = vcmask 31744
      %v361 = vsel %vm359, %v293, 0
      %v364 = vsel %vm359, %v294, 0
      %v367 = vsel %vm359, %v295, 0
      %v370 = vsel %vm359, %v296, 0
      %v373 = vsel %vm359, %v297, 0
      %v376 = vsel %vm359, %v298, 0
      %v379 = vsel %vm359, %v299, 0
      %v382 = vsel %vm359, %v300, 0
      %v385 = vsel %vm359, %v301, 0
      %v388 = vsel %vm359, %v302, 0
      %v391 = vsel %vm359, %v303, 0
      %v394 = vsel %vm359, %v304, 0
      %v397 = vsel %vm359, %v305, 0
      %v400 = vsel %vm359, %v306, 0
      %v403 = vsel %vm359, %v307, 0
      %v406 = vsel %vm359, %v308, 0
      %v409 = vsel %vm359, %v309, 0
      %v412 = vsel %vm359, %v310, 0
      %v415 = vsel %vm359, %v311, 0
      %v418 = vsel %vm359, %v312, 0
      %v421 = vsel %vm359, %v313, 0
      %v424 = vsel %vm359, %v314, 0
      %v427 = vsel %vm359, %v315, 0
      %v430 = vsel %vm359, %v316, 0
      %v433 = vsel %vm359, %v317, 0
      %v436 = vsel %vm359, %v318, 0
      %v439 = vsel %vm359, %v319, 0
      %v442 = vsel %vm359, %v320, 0
      %v445 = vsel %vm359, %v321, 0
      %v448 = vsel %vm359, %v322, 0
      %v451 = vsel %vm359, %v323, 0
      %v454 = vsel %vm359, %v324, 0
      %v457 = vsel %vm359, %v325, 0
      %v460 = vsel %vm359, %v326, 0
      %v463 = vsel %vm359, %v327, 0
      %v466 = vsel %vm359, %v328, 0
      %v469 = vsel %vm359, %v329, 0
      %v472 = vsel %vm359, %v330, 0
      %v475 = vsel %vm359, %v331, 0
      %v478 = vsel %vm359, %v332, 0
      %v481 = vsel %vm359, %v333, 0
      %v484 = vsel %vm359, %v334, 0
      %v487 = vsel %vm359, %v335, 0
      %v490 = vsel %vm359, %v336, 0
      %v493 = vsel %vm359, %v337, 0
      %v496 = vsel %vm359, %v338, 0
      %v499 = vsel %vm359, %v339, 0
      %v502 = vsel %vm359, %v340, 0
      %v505 = vsel %vm359, %v341, 0
      %v508 = vsel %vm359, %v342, 0
      %v511 = vsel %vm359, %v343, 0
      %v514 = vsel %vm359, %v344, 0
      %v517 = vsel %vm359, %v345, 0
      %v520 = vsel %vm359, %v346, 0
      %v523 = vsel %vm359, %v347, 0
      %v526 = vsel %vm359, %v348, 0
      %v529 = vsel %vm359, %v349, 0
      %v532 = vsel %vm359, %v350, 0
      %v535 = vsel %vm359, %v351, 0
      %v538 = vsel %vm359, %v352, 0
      %v541 = vsel %vm359, %v353, 0
      %v544 = vsel %vm359, %v354, 0
      %v547 = vsel %vm359, %v355, 0
      %v550 = vsel %vm359, %v356, 0
      %vm552 = vcmask 1043456
      %v553 = vsel %vm552, %v292, 0
      %v555 = vsel %vm552, %v358, 0
      %557 = vmatprep.subr.mxu0 %v555
      %558 = vmatpush1.msra.mxu0 %v553
      %559 = vmatprep.subr.mxu0 0.0
      %560 = vmatpush1.msra.mxu0 0.0
      %561 = vmatprep.subr.mxu0 0.0
      %562 = vmatpush1.msra.mxu0 0.0
      %563 = vmatprep.subr.mxu0 0.0
      %564 = vmatpush1.msra.mxu0 0.0
      %565 = vmatprep.subr.mxu0 0.0
      %566 = vmatpush1.msra.mxu0 0.0
      %567 = vmatprep.subr.mxu0 0.0
      %568 = vmatpush1.msra.mxu0 0.0
      %569 = vmatprep.subr.mxu0 0.0
      %570 = vmatpush1.msra.mxu0 0.0
      %571 = vmatprep.subr.mxu0 0.0
      %572 = vmatpush1.msra.mxu0 0.0
      %573 = vmatprep.subr.mxu0 0.0
      %574 = vmatpush1.msra.mxu0 0.0
      %575 = vmatprep.subr.mxu0 0.0
      %576 = vmatpush1.msra.mxu0 0.0
      %577 = vmatprep.subr.mxu0 0.0
      %578 = vmatpush1.msra.mxu0 0.0
      %579 = vmatprep.subr.mxu0 0.0
      %580 = vmatpush1.msra.mxu0 0.0
      %581 = vmatprep.subr.mxu0 0.0
      %582 = vmatpush1.msra.mxu0 0.0
      %583 = vmatprep.subr.mxu0 0.0
      %584 = vmatpush1.msra.mxu0 0.0
      %585 = vmatprep.subr.mxu0 0.0
      %586 = vmatpush1.msra.mxu0 0.0
      %587 = vmatprep.subr.mxu0 0.0
      %588 = vmatpush1.msra.mxu0 0.0
      %589 = vmatprep.subr.mxu0 0.0
      %590 = vmatpush1.msra.mxu0 0.0
      %591 = vmatprep.subr.mxu0 0.0
      %592 = vmatpush1.msra.mxu0 0.0
      %593 = vmatprep.subr.mxu0 0.0
      %594 = vmatpush1.msra.mxu0 0.0
      %595 = vmatprep.subr.mxu0 0.0
      %596 = vmatpush1.msra.mxu0 0.0
      %597 = vmatprep.subr.mxu0 0.0
      %598 = vmatpush1.msra.mxu0 0.0
      %599 = vmatprep.subr.mxu0 0.0
      %600 = vmatpush1.msra.mxu0 0.0
      %601 = vmatprep.subr.mxu0 0.0
      %602 = vmatpush1.msra.mxu0 0.0
      %603 = vmatprep.subr.mxu0 0.0
      %604 = vmatpush1.msra.mxu0 0.0
      %605 = vmatprep.subr.mxu0 0.0
      %606 = vmatpush1.msra.mxu0 0.0
      %607 = vmatprep.subr.mxu0 0.0
      %608 = vmatpush1.msra.mxu0 0.0
      %609 = vmatprep.subr.mxu0 0.0
      %610 = vmatpush1.msra.mxu0 0.0
      %611 = vmatprep.subr.mxu0 0.0
      %612 = vmatpush1.msra.mxu0 0.0
      %613 = vmatprep.subr.mxu0 0.0
      %614 = vmatpush1.msra.mxu0 0.0
      %615 = vmatprep.subr.mxu0 0.0
      %616 = vmatpush1.msra.mxu0 0.0
      %617 = vmatprep.subr.mxu0 0.0
      %618 = vmatpush1.msra.mxu0 0.0
      %619 = vmatprep.subr.mxu0 0.0
      %620 = vmatpush1.msra.mxu0 0.0
      %621 = vmatprep.mubr.f32.mxu0 0.0
      %622 = vmatmul.mubr.f32.gmra.mrb[0].mxu0 %v361
      %v623 = vpop.f32.mrb[0].mxu0
      %v624 = vadd.f32 0.0, %v623
      %v625 = vpop.f32.mrb[0].mxu0
      %v626 = vadd.f32 0.0, %v625
      %627 = vmatprep.mubr.f32.mxu0 0.0
      %628 = vmatmul.mubr.f32.gmra.mrb[0].mxu0 %v364
      %v629 = vpop.f32.mrb[0].mxu0
      %v630 = vadd.f32 0.0, %v629
      %v631 = vpop.f32.mrb[0].mxu0
      %v632 = vadd.f32 0.0, %v631
      %633 = vmatprep.mubr.f32.mxu0 0.0
      %634 = vmatmul.mubr.f32.gmra.mrb[0].mxu0 %v367
      %v635 = vpop.f32.mrb[0].mxu0
      %v636 = vadd.f32 0.0, %v635
      %v637 = vpop.f32.mrb[0].mxu0
      %v638 = vadd.f32 0.0, %v637
      %639 = vmatprep.mubr.f32.mxu0 0.0
      %640 = vmatmul.mubr.f32.gmra.mrb[0].mxu0 %v370
      %v641 = vpop.f32.mrb[0].mxu0
      %v642 = vadd.f32 0.0, %v641
      %v643 = vpop.f32.mrb[0].mxu0
      %v644 = vadd.f32 0.0, %v643
      %645 = vmatprep.mubr.f32.mxu0 0.0
      %646 = vmatmul.mubr.f32.gmra.mrb[0].mxu0 %v373
      %v647 = vpop.f32.mrb[0].mxu0
      %v648 = vadd.f32 0.0, %v647
      %v649 = vpop.f32.mrb[0].mxu0
      %v650 = vadd.f32 0.0, %v649
      %651 = vmatprep.mubr.f32.mxu0 0.0
      %652 = vmatmul.mubr.f32.gmra.mrb[0].mxu0 %v376
      %v653 = vpop.f32.mrb[0].mxu0
      %v654 = vadd.f32 0.0, %v653
      %v655 = vpop.f32.mrb[0].mxu0
      %v656 = vadd.f32 0.0, %v655
      %657 = vmatprep.mubr.f32.mxu0 0.0
      %658 = vmatmul.mubr.f32.gmra.mrb[0].mxu0 %v379
      %v659 = vpop.f32.mrb[0].mxu0
      %v660 = vadd.f32 0.0, %v659
      %v661 = vpop.f32.mrb[0].mxu0
      %v662 = vadd.f32 0.0, %v661
      %663 = vmatprep.mubr.f32.mxu0 0.0
      %664 = vmatmul.mubr.f32.gmra.mrb[0].mxu0 %v382
      %v665 = vpop.f32.mrb[0].mxu0
      %v666 = vadd.f32 0.0, %v665
      %v667 = vpop.f32.mrb[0].mxu0
      %v668 = vadd.f32 0.0, %v667
      %669 = vmatprep.mubr.f32.mxu0 0.0
      %670 = vmatmul.mubr.f32.gmra.mrb[0].mxu0 %v385
      %v671 = vpop.f32.mrb[0].mxu0
      %v672 = vadd.f32 0.0, %v671
      %v673 = vpop.f32.mrb[0].mxu0
      %v674 = vadd.f32 0.0, %v673
      %675 = vmatprep.mubr.f32.mxu0 0.0
      %676 = vmatmul.mubr.f32.gmra.mrb[0].mxu0 %v388
      %v677 = vpop.f32.mrb[0].mxu0
      %v678 = vadd.f32 0.0, %v677
      %v679 = vpop.f32.mrb[0].mxu0
      %v680 = vadd.f32 0.0, %v679
      %681 = vmatprep.mubr.f32.mxu0 0.0
      %682 = vmatmul.mubr.f32.gmra.mrb[0].mxu0 %v391
      %v683 = vpop.f32.mrb[0].mxu0
      %v684 = vadd.f32 0.0, %v683
      %v685 = vpop.f32.mrb[0].mxu0
      %v686 = vadd.f32 0.0, %v685
      %687 = vmatprep.mubr.f32.mxu0 0.0
      %688 = vmatmul.mubr.f32.gmra.mrb[0].mxu0 %v394
      %v689 = vpop.f32.mrb[0].mxu0
      %v690 = vadd.f32 0.0, %v689
      %v691 = vpop.f32.mrb[0].mxu0
      %v692 = vadd.f32 0.0, %v691
      %693 = vmatprep.mubr.f32.mxu0 0.0
      %694 = vmatmul.mubr.f32.gmra.mrb[0].mxu0 %v397
      %v695 = vpop.f32.mrb[0].mxu0
      %v696 = vadd.f32 0.0, %v695
      %v697 = vpop.f32.mrb[0].mxu0
      %v698 = vadd.f32 0.0, %v697
      %699 = vmatprep.mubr.f32.mxu0 0.0
      %700 = vmatmul.mubr.f32.gmra.mrb[0].mxu0 %v400
      %v701 = vpop.f32.mrb[0].mxu0
      %v702 = vadd.f32 0.0, %v701
      %v703 = vpop.f32.mrb[0].mxu0
      %v704 = vadd.f32 0.0, %v703
      %705 = vmatprep.mubr.f32.mxu0 0.0
      %706 = vmatmul.mubr.f32.gmra.mrb[0].mxu0 %v403
      %v707 = vpop.f32.mrb[0].mxu0
      %v708 = vadd.f32 0.0, %v707
      %v709 = vpop.f32.mrb[0].mxu0
      %v710 = vadd.f32 0.0, %v709
      %711 = vmatprep.mubr.f32.mxu0 0.0
      %712 = vmatmul.mubr.f32.gmra.mrb[0].mxu0 %v406
      %v713 = vpop.f32.mrb[0].mxu0
      %v714 = vadd.f32 0.0, %v713
      %v715 = vpop.f32.mrb[0].mxu0
      %v716 = vadd.f32 0.0, %v715
      %717 = vmatprep.mubr.f32.mxu0 0.0
      %718 = vmatmul.mubr.f32.gmra.mrb[0].mxu0 %v409
      %v719 = vpop.f32.mrb[0].mxu0
      %v720 = vadd.f32 0.0, %v719
      %v721 = vpop.f32.mrb[0].mxu0
      %v722 = vadd.f32 0.0, %v721
      %723 = vmatprep.mubr.f32.mxu0 0.0
      %724 = vmatmul.mubr.f32.gmra.mrb[0].mxu0 %v412
      %v725 = vpop.f32.mrb[0].mxu0
      %v726 = vadd.f32 0.0, %v725
      %v727 = vpop.f32.mrb[0].mxu0
      %v728 = vadd.f32 0.0, %v727
      %729 = vmatprep.mubr.f32.mxu0 0.0
      %730 = vmatmul.mubr.f32.gmra.mrb[0].mxu0 %v415
      %v731 = vpop.f32.mrb[0].mxu0
      %v732 = vadd.f32 0.0, %v731
      %v733 = vpop.f32.mrb[0].mxu0
      %v734 = vadd.f32 0.0, %v733
      %735 = vmatprep.mubr.f32.mxu0 0.0
      %736 = vmatmul.mubr.f32.gmra.mrb[0].mxu0 %v418
      %v737 = vpop.f32.mrb[0].mxu0
      %v738 = vadd.f32 0.0, %v737
      %v739 = vpop.f32.mrb[0].mxu0
      %v740 = vadd.f32 0.0, %v739
      %741 = vmatprep.mubr.f32.mxu0 0.0
      %742 = vmatmul.mubr.f32.gmra.mrb[0].mxu0 %v421
      %v743 = vpop.f32.mrb[0].mxu0
      %v744 = vadd.f32 0.0, %v743
      %v745 = vpop.f32.mrb[0].mxu0
      %v746 = vadd.f32 0.0, %v745
      %747 = vmatprep.mubr.f32.mxu0 0.0
      %748 = vmatmul.mubr.f32.gmra.mrb[0].mxu0 %v424
      %v749 = vpop.f32.mrb[0].mxu0
      %v750 = vadd.f32 0.0, %v749
      %v751 = vpop.f32.mrb[0].mxu0
      %v752 = vadd.f32 0.0, %v751
      %753 = vmatprep.mubr.f32.mxu0 0.0
      %754 = vmatmul.mubr.f32.gmra.mrb[0].mxu0 %v427
      %v755 = vpop.f32.mrb[0].mxu0
      %v756 = vadd.f32 0.0, %v755
      %v757 = vpop.f32.mrb[0].mxu0
      %v758 = vadd.f32 0.0, %v757
      %759 = vmatprep.mubr.f32.mxu0 0.0
      %760 = vmatmul.mubr.f32.gmra.mrb[0].mxu0 %v430
      %v761 = vpop.f32.mrb[0].mxu0
      %v762 = vadd.f32 0.0, %v761
      %v763 = vpop.f32.mrb[0].mxu0
      %v764 = vadd.f32 0.0, %v763
      %765 = vmatprep.mubr.f32.mxu0 0.0
      %766 = vmatmul.mubr.f32.gmra.mrb[0].mxu0 %v433
      %v767 = vpop.f32.mrb[0].mxu0
      %v768 = vadd.f32 0.0, %v767
      %v769 = vpop.f32.mrb[0].mxu0
      %v770 = vadd.f32 0.0, %v769
      %771 = vmatprep.mubr.f32.mxu0 0.0
      %772 = vmatmul.mubr.f32.gmra.mrb[0].mxu0 %v436
      %v773 = vpop.f32.mrb[0].mxu0
      %v774 = vadd.f32 0.0, %v773
      %v775 = vpop.f32.mrb[0].mxu0
      %v776 = vadd.f32 0.0, %v775
      %777 = vmatprep.mubr.f32.mxu0 0.0
      %778 = vmatmul.mubr.f32.gmra.mrb[0].mxu0 %v439
      %v779 = vpop.f32.mrb[0].mxu0
      %v780 = vadd.f32 0.0, %v779
      %v781 = vpop.f32.mrb[0].mxu0
      %v782 = vadd.f32 0.0, %v781
      %783 = vmatprep.mubr.f32.mxu0 0.0
      %784 = vmatmul.mubr.f32.gmra.mrb[0].mxu0 %v442
      %v785 = vpop.f32.mrb[0].mxu0
      %v786 = vadd.f32 0.0, %v785
      %v787 = vpop.f32.mrb[0].mxu0
      %v788 = vadd.f32 0.0, %v787
      %789 = vmatprep.mubr.f32.mxu0 0.0
      %790 = vmatmul.mubr.f32.gmra.mrb[0].mxu0 %v445
      %v791 = vpop.f32.mrb[0].mxu0
      %v792 = vadd.f32 0.0, %v791
      %v793 = vpop.f32.mrb[0].mxu0
      %v794 = vadd.f32 0.0, %v793
      %795 = vmatprep.mubr.f32.mxu0 0.0
      %796 = vmatmul.mubr.f32.gmra.mrb[0].mxu0 %v448
      %v797 = vpop.f32.mrb[0].mxu0
      %v798 = vadd.f32 0.0, %v797
      %v799 = vpop.f32.mrb[0].mxu0
      %v800 = vadd.f32 0.0, %v799
      %801 = vmatprep.mubr.f32.mxu0 0.0
      %802 = vmatmul.mubr.f32.gmra.mrb[0].mxu0 %v451
      %v803 = vpop.f32.mrb[0].mxu0
      %v804 = vadd.f32 0.0, %v803
      %v805 = vpop.f32.mrb[0].mxu0
      %v806 = vadd.f32 0.0, %v805
      %807 = vmatprep.mubr.f32.mxu0 0.0
      %808 = vmatmul.mubr.f32.gmra.mrb[0].mxu0 %v454
      %v809 = vpop.f32.mrb[0].mxu0
      %v810 = vadd.f32 0.0, %v809
      %v811 = vpop.f32.mrb[0].mxu0
      %v812 = vadd.f32 0.0, %v811
      %813 = vmatprep.mubr.f32.mxu0 0.0
      %814 = vmatmul.mubr.f32.gmra.mrb[0].mxu0 %v457
      %v815 = vpop.f32.mrb[0].mxu0
      %v816 = vadd.f32 0.0, %v815
      %v817 = vpop.f32.mrb[0].mxu0
      %v818 = vadd.f32 0.0, %v817
      %819 = vmatprep.mubr.f32.mxu0 0.0
      %820 = vmatmul.mubr.f32.gmra.mrb[0].mxu0 %v460
      %v821 = vpop.f32.mrb[0].mxu0
      %v822 = vadd.f32 0.0, %v821
      %v823 = vpop.f32.mrb[0].mxu0
      %v824 = vadd.f32 0.0, %v823
      %825 = vmatprep.mubr.f32.mxu0 0.0
      %826 = vmatmul.mubr.f32.gmra.mrb[0].mxu0 %v463
      %v827 = vpop.f32.mrb[0].mxu0
      %v828 = vadd.f32 0.0, %v827
      %v829 = vpop.f32.mrb[0].mxu0
      %v830 = vadd.f32 0.0, %v829
      %831 = vmatprep.mubr.f32.mxu0 0.0
      %832 = vmatmul.mubr.f32.gmra.mrb[0].mxu0 %v466
      %v833 = vpop.f32.mrb[0].mxu0
      %v834 = vadd.f32 0.0, %v833
      %v835 = vpop.f32.mrb[0].mxu0
      %v836 = vadd.f32 0.0, %v835
      %837 = vmatprep.mubr.f32.mxu0 0.0
      %838 = vmatmul.mubr.f32.gmra.mrb[0].mxu0 %v469
      %v839 = vpop.f32.mrb[0].mxu0
      %v840 = vadd.f32 0.0, %v839
      %v841 = vpop.f32.mrb[0].mxu0
      %v842 = vadd.f32 0.0, %v841
      %843 = vmatprep.mubr.f32.mxu0 0.0
      %844 = vmatmul.mubr.f32.gmra.mrb[0].mxu0 %v472
      %v845 = vpop.f32.mrb[0].mxu0
      %v846 = vadd.f32 0.0, %v845
      %v847 = vpop.f32.mrb[0].mxu0
      %v848 = vadd.f32 0.0, %v847
      %849 = vmatprep.mubr.f32.mxu0 0.0
      %850 = vmatmul.mubr.f32.gmra.mrb[0].mxu0 %v475
      %v851 = vpop.f32.mrb[0].mxu0
      %v852 = vadd.f32 0.0, %v851
      %v853 = vpop.f32.mrb[0].mxu0
      %v854 = vadd.f32 0.0, %v853
      %855 = vmatprep.mubr.f32.mxu0 0.0
      %856 = vmatmul.mubr.f32.gmra.mrb[0].mxu0 %v478
      %v857 = vpop.f32.mrb[0].mxu0
      %v858 = vadd.f32 0.0, %v857
      %v859 = vpop.f32.mrb[0].mxu0
      %v860 = vadd.f32 0.0, %v859
      %861 = vmatprep.mubr.f32.mxu0 0.0
      %862 = vmatmul.mubr.f32.gmra.mrb[0].mxu0 %v481
      %v863 = vpop.f32.mrb[0].mxu0
      %v864 = vadd.f32 0.0, %v863
      %v865 = vpop.f32.mrb[0].mxu0
      %v866 = vadd.f32 0.0, %v865
      %867 = vmatprep.mubr.f32.mxu0 0.0
      %868 = vmatmul.mubr.f32.gmra.mrb[0].mxu0 %v484
      %v869 = vpop.f32.mrb[0].mxu0
      %v870 = vadd.f32 0.0, %v869
      %v871 = vpop.f32.mrb[0].mxu0
      %v872 = vadd.f32 0.0, %v871
      %873 = vmatprep.mubr.f32.mxu0 0.0
      %874 = vmatmul.mubr.f32.gmra.mrb[0].mxu0 %v487
      %v875 = vpop.f32.mrb[0].mxu0
      %v876 = vadd.f32 0.0, %v875
      %v877 = vpop.f32.mrb[0].mxu0
      %v878 = vadd.f32 0.0, %v877
      %879 = vmatprep.mubr.f32.mxu0 0.0
      %880 = vmatmul.mubr.f32.gmra.mrb[0].mxu0 %v490
      %v881 = vpop.f32.mrb[0].mxu0
      %v882 = vadd.f32 0.0, %v881
      %v883 = vpop.f32.mrb[0].mxu0
      %v884 = vadd.f32 0.0, %v883
      %885 = vmatprep.mubr.f32.mxu0 0.0
      %886 = vmatmul.mubr.f32.gmra.mrb[0].mxu0 %v493
      %v887 = vpop.f32.mrb[0].mxu0
      %v888 = vadd.f32 0.0, %v887
      %v889 = vpop.f32.mrb[0].mxu0
      %v890 = vadd.f32 0.0, %v889
      %891 = vmatprep.mubr.f32.mxu0 0.0
      %892 = vmatmul.mubr.f32.gmra.mrb[0].mxu0 %v496
      %v893 = vpop.f32.mrb[0].mxu0
      %v894 = vadd.f32 0.0, %v893
      %v895 = vpop.f32.mrb[0].mxu0
      %v896 = vadd.f32 0.0, %v895
      %897 = vmatprep.mubr.f32.mxu0 0.0
      %898 = vmatmul.mubr.f32.gmra.mrb[0].mxu0 %v499
      %v899 = vpop.f32.mrb[0].mxu0
      %v900 = vadd.f32 0.0, %v899
      %v901 = vpop.f32.mrb[0].mxu0
      %v902 = vadd.f32 0.0, %v901
      %903 = vmatprep.mubr.f32.mxu0 0.0
      %904 = vmatmul.mubr.f32.gmra.mrb[0].mxu0 %v502
      %v905 = vpop.f32.mrb[0].mxu0
      %v906 = vadd.f32 0.0, %v905
      %v907 = vpop.f32.mrb[0].mxu0
      %v908 = vadd.f32 0.0, %v907
      %909 = vmatprep.mubr.f32.mxu0 0.0
      %910 = vmatmul.mubr.f32.gmra.mrb[0].mxu0 %v505
      %v911 = vpop.f32.mrb[0].mxu0
      %v912 = vadd.f32 0.0, %v911
      %v913 = vpop.f32.mrb[0].mxu0
      %v914 = vadd.f32 0.0, %v913
      %915 = vmatprep.mubr.f32.mxu0 0.0
      %916 = vmatmul.mubr.f32.gmra.mrb[0].mxu0 %v508
      %v917 = vpop.f32.mrb[0].mxu0
      %v918 = vadd.f32 0.0, %v917
      %v919 = vpop.f32.mrb[0].mxu0
      %v920 = vadd.f32 0.0, %v919
      %921 = vmatprep.mubr.f32.mxu0 0.0
      %922 = vmatmul.mubr.f32.gmra.mrb[0].mxu0 %v511
      %v923 = vpop.f32.mrb[0].mxu0
      %v924 = vadd.f32 0.0, %v923
      %v925 = vpop.f32.mrb[0].mxu0
      %v926 = vadd.f32 0.0, %v925
      %927 = vmatprep.mubr.f32.mxu0 0.0
      %928 = vmatmul.mubr.f32.gmra.mrb[0].mxu0 %v514
      %v929 = vpop.f32.mrb[0].mxu0
      %v930 = vadd.f32 0.0, %v929
      %v931 = vpop.f32.mrb[0].mxu0
      %v932 = vadd.f32 0.0, %v931
      %933 = vmatprep.mubr.f32.mxu0 0.0
      %934 = vmatmul.mubr.f32.gmra.mrb[0].mxu0 %v517
      %v935 = vpop.f32.mrb[0].mxu0
      %v936 = vadd.f32 0.0, %v935
      %v937 = vpop.f32.mrb[0].mxu0
      %v938 = vadd.f32 0.0, %v937
      %939 = vmatprep.mubr.f32.mxu0 0.0
      %940 = vmatmul.mubr.f32.gmra.mrb[0].mxu0 %v520
      %v941 = vpop.f32.mrb[0].mxu0
      %v942 = vadd.f32 0.0, %v941
      %v943 = vpop.f32.mrb[0].mxu0
      %v944 = vadd.f32 0.0, %v943
      %945 = vmatprep.mubr.f32.mxu0 0.0
      %946 = vmatmul.mubr.f32.gmra.mrb[0].mxu0 %v523
      %v947 = vpop.f32.mrb[0].mxu0
      %v948 = vadd.f32 0.0, %v947
      %v949 = vpop.f32.mrb[0].mxu0
      %v950 = vadd.f32 0.0, %v949
      %951 = vmatprep.mubr.f32.mxu0 0.0
      %952 = vmatmul.mubr.f32.gmra.mrb[0].mxu0 %v526
      %v953 = vpop.f32.mrb[0].mxu0
      %v954 = vadd.f32 0.0, %v953
      %v955 = vpop.f32.mrb[0].mxu0
      %v956 = vadd.f32 0.0, %v955
      %957 = vmatprep.mubr.f32.mxu0 0.0
      %958 = vmatmul.mubr.f32.gmra.mrb[0].mxu0 %v529
      %v959 = vpop.f32.mrb[0].mxu0
      %v960 = vadd.f32 0.0, %v959
      %v961 = vpop.f32.mrb[0].mxu0
      %v962 = vadd.f32 0.0, %v961
      %963 = vmatprep.mubr.f32.mxu0 0.0
      %964 = vmatmul.mubr.f32.gmra.mrb[0].mxu0 %v532
      %v965 = vpop.f32.mrb[0].mxu0
      %v966 = vadd.f32 0.0, %v965
      %v967 = vpop.f32.mrb[0].mxu0
      %v968 = vadd.f32 0.0, %v967
      %969 = vmatprep.mubr.f32.mxu0 0.0
      %970 = vmatmul.mubr.f32.gmra.mrb[0].mxu0 %v535
      %v971 = vpop.f32.mrb[0].mxu0
      %v972 = vadd.f32 0.0, %v971
      %v973 = vpop.f32.mrb[0].mxu0
      %v974 = vadd.f32 0.0, %v973
      %975 = vmatprep.mubr.f32.mxu0 0.0
      %976 = vmatmul.mubr.f32.gmra.mrb[0].mxu0 %v538
      %v977 = vpop.f32.mrb[0].mxu0
      %v978 = vadd.f32 0.0, %v977
      %v979 = vpop.f32.mrb[0].mxu0
      %v980 = vadd.f32 0.0, %v979
      %981 = vmatprep.mubr.f32.mxu0 0.0
      %982 = vmatmul.mubr.f32.gmra.mrb[0].mxu0 %v541
      %v983 = vpop.f32.mrb[0].mxu0
      %v984 = vadd.f32 0.0, %v983
      %v985 = vpop.f32.mrb[0].mxu0
      %v986 = vadd.f32 0.0, %v985
      %987 = vmatprep.mubr.f32.mxu0 0.0
      %988 = vmatmul.mubr.f32.gmra.mrb[0].mxu0 %v544
      %v989 = vpop.f32.mrb[0].mxu0
      %v990 = vadd.f32 0.0, %v989
      %v991 = vpop.f32.mrb[0].mxu0
      %v992 = vadd.f32 0.0, %v991
      %993 = vmatprep.mubr.f32.mxu0 0.0
      %994 = vmatmul.mubr.f32.gmra.mrb[0].mxu0 %v547
      %v995 = vpop.f32.mrb[0].mxu0
      %v996 = vadd.f32 0.0, %v995
      %v997 = vpop.f32.mrb[0].mxu0
      %v998 = vadd.f32 0.0, %v997
      %999 = vmatprep.mubr.f32.mxu0 0.0
      %1000 = vmatmul.mubr.f32.gmra.mrb[0].mxu0 %v550
      %v1001 = vpop.f32.mrb[0].mxu0
      %v1002 = vadd.f32 0.0, %v1001
      %v1003 = vpop.f32.mrb[0].mxu0
      %v1004 = vadd.f32 0.0, %v1003
      %1005 = vdwg.mxu0
      %v1006 = vmax.f32 %v624, 0.0
      %v1007 = vmax.f32 %v626, 0.0
      %v1008 = vmax.f32 %v630, 0.0
      %v1009 = vmax.f32 %v632, 0.0
      %v1010 = vmax.f32 %v636, 0.0
      %v1011 = vmax.f32 %v638, 0.0
      %v1012 = vmax.f32 %v642, 0.0
      %v1013 = vmax.f32 %v644, 0.0
      %v1014 = vmax.f32 %v648, 0.0
      %v1015 = vmax.f32 %v650, 0.0
      %v1016 = vmax.f32 %v654, 0.0
      %v1017 = vmax.f32 %v656, 0.0
      %v1018 = vmax.f32 %v660, 0.0
      %v1019 = vmax.f32 %v662, 0.0
      %v1020 = vmax.f32 %v666, 0.0
      %v1021 = vmax.f32 %v668, 0.0
      %v1022 = vmax.f32 %v672, 0.0
      %v1023 = vmax.f32 %v674, 0.0
      %v1024 = vmax.f32 %v678, 0.0
      %v1025 = vmax.f32 %v680, 0.0
      %v1026 = vmax.f32 %v684, 0.0
      %v1027 = vmax.f32 %v686, 0.0
      %v1028 = vmax.f32 %v690, 0.0
      %v1029 = vmax.f32 %v692, 0.0
      %v1030 = vmax.f32 %v696, 0.0
      %v1031 = vmax.f32 %v698, 0.0
      %v1032 = vmax.f32 %v702, 0.0
      %v1033 = vmax.f32 %v704, 0.0
      %v1034 = vmax.f32 %v708, 0.0
      %v1035 = vmax.f32 %v710, 0.0
      %v1036 = vmax.f32 %v714, 0.0
      %v1037 = vmax.f32 %v716, 0.0
      %v1038 = vmax.f32 %v720, 0.0
      %v1039 = vmax.f32 %v722, 0.0
      %v1040 = vmax.f32 %v726, 0.0
      %v1041 = vmax.f32 %v728, 0.0
      %v1042 = vmax.f32 %v732, 0.0
      %v1043 = vmax.f32 %v734, 0.0
      %v1044 = vmax.f32 %v738, 0.0
      %v1045 = vmax.f32 %v740, 0.0
      %v1046 = vmax.f32 %v744, 0.0
      %v1047 = vmax.f32 %v746, 0.0
      %v1048 = vmax.f32 %v750, 0.0
      %v1049 = vmax.f32 %v752, 0.0
      %v1050 = vmax.f32 %v756, 0.0
      %v1051 = vmax.f32 %v758, 0.0
      %v1052 = vmax.f32 %v762, 0.0
      %v1053 = vmax.f32 %v764, 0.0
      %v1054 = vmax.f32 %v768, 0.0
      %v1055 = vmax.f32 %v770, 0.0
      %v1056 = vmax.f32 %v774, 0.0
      %v1057 = vmax.f32 %v776, 0.0
      %v1058 = vmax.f32 %v780, 0.0
      %v1059 = vmax.f32 %v782, 0.0
      %v1060 = vmax.f32 %v786, 0.0
      %v1061 = vmax.f32 %v788, 0.0
      %v1062 = vmax.f32 %v792, 0.0
      %v1063 = vmax.f32 %v794, 0.0
      %v1064 = vmax.f32 %v798, 0.0
      %v1065 = vmax.f32 %v800, 0.0
      %v1066 = vmax.f32 %v804, 0.0
      %v1067 = vmax.f32 %v806, 0.0
      %v1068 = vmax.f32 %v810, 0.0
      %v1069 = vmax.f32 %v812, 0.0
      %v1070 = vmax.f32 %v816, 0.0
      %v1071 = vmax.f32 %v818, 0.0
      %v1072 = vmax.f32 %v822, 0.0
      %v1073 = vmax.f32 %v824, 0.0
      %v1074 = vmax.f32 %v828, 0.0
      %v1075 = vmax.f32 %v830, 0.0
      %v1076 = vmax.f32 %v834, 0.0
      %v1077 = vmax.f32 %v836, 0.0
      %v1078 = vmax.f32 %v840, 0.0
      %v1079 = vmax.f32 %v842, 0.0
      %v1080 = vmax.f32 %v846, 0.0
      %v1081 = vmax.f32 %v848, 0.0
      %v1082 = vmax.f32 %v852, 0.0
      %v1083 = vmax.f32 %v854, 0.0
      %v1084 = vmax.f32 %v858, 0.0
      %v1085 = vmax.f32 %v860, 0.0
      %v1086 = vmax.f32 %v864, 0.0
      %v1087 = vmax.f32 %v866, 0.0
      %v1088 = vmax.f32 %v870, 0.0
      %v1089 = vmax.f32 %v872, 0.0
      %v1090 = vmax.f32 %v876, 0.0
      %v1091 = vmax.f32 %v878, 0.0
      %v1092 = vmax.f32 %v882, 0.0
      %v1093 = vmax.f32 %v884, 0.0
      %v1094 = vmax.f32 %v888, 0.0
      %v1095 = vmax.f32 %v890, 0.0
      %v1096 = vmax.f32 %v894, 0.0
      %v1097 = vmax.f32 %v896, 0.0
      %v1098 = vmax.f32 %v900, 0.0
      %v1099 = vmax.f32 %v902, 0.0
      %v1100 = vmax.f32 %v906, 0.0
      %v1101 = vmax.f32 %v908, 0.0
      %v1102 = vmax.f32 %v912, 0.0
      %v1103 = vmax.f32 %v914, 0.0
      %v1104 = vmax.f32 %v918, 0.0
      %v1105 = vmax.f32 %v920, 0.0
      %v1106 = vmax.f32 %v924, 0.0
      %v1107 = vmax.f32 %v926, 0.0
      %v1108 = vmax.f32 %v930, 0.0
      %v1109 = vmax.f32 %v932, 0.0
      %v1110 = vmax.f32 %v936, 0.0
      %v1111 = vmax.f32 %v938, 0.0
      %v1112 = vmax.f32 %v942, 0.0
      %v1113 = vmax.f32 %v944, 0.0
      %v1114 = vmax.f32 %v948, 0.0
      %v1115 = vmax.f32 %v950, 0.0
      %v1116 = vmax.f32 %v954, 0.0
      %v1117 = vmax.f32 %v956, 0.0
      %v1118 = vmax.f32 %v960, 0.0
      %v1119 = vmax.f32 %v962, 0.0
      %v1120 = vmax.f32 %v966, 0.0
      %v1121 = vmax.f32 %v968, 0.0
      %v1122 = vmax.f32 %v972, 0.0
      %v1123 = vmax.f32 %v974, 0.0
      %v1124 = vmax.f32 %v978, 0.0
      %v1125 = vmax.f32 %v980, 0.0
      %v1126 = vmax.f32 %v984, 0.0
      %v1127 = vmax.f32 %v986, 0.0
      %v1128 = vmax.f32 %v990, 0.0
      %v1129 = vmax.f32 %v992, 0.0
      %v1130 = vmax.f32 %v996, 0.0
      %v1131 = vmax.f32 %v998, 0.0
      %v1132 = vmax.f32 %v1002, 0.0
      %v1133 = vmax.f32 %v1004, 0.0
      %v1134 = vld [vmem:[#allocation2] sm:$0xff]
      %v1135 = vld [vmem:[#allocation2 + $0x8] sm:$0xff]
      %v1136 = vld [vmem:[#allocation2 + $0x10] sm:$0xff]
      %v1137 = vld [vmem:[#allocation2 + $0x18] sm:$0xff]
      %v1138 = vld [vmem:[#allocation2 + $0x20] sm:$0xff]
      %v1139 = vld [vmem:[#allocation2 + $0x28] sm:$0xff]
      %v1140 = vld [vmem:[#allocation2 + $0x30] sm:$0xff]
      %v1141 = vld [vmem:[#allocation2 + $0x38] sm:$0xff]
      %v1142 = vld [vmem:[#allocation2 + $0x40] sm:$0xff]
      %v1143 = vld [vmem:[#allocation2 + $0x48] sm:$0xff]
      %v1144 = vld [vmem:[#allocation2 + $0x50] sm:$0xff]
      %v1145 = vld [vmem:[#allocation2 + $0x58] sm:$0xff]
      %v1146 = vld [vmem:[#allocation2 + $0x60] sm:$0xff]
      %v1147 = vld [vmem:[#allocation2 + $0x68] sm:$0xff]
      %v1148 = vld [vmem:[#allocation2 + $0x70] sm:$0xff]
      %v1149 = vld [vmem:[#allocation2 + $0x78] sm:$0xff]
      %v1150 = vld [vmem:[#allocation2 + $0x80] sm:$0xff]
      %v1151 = vld [vmem:[#allocation2 + $0x88] sm:$0xff]
      %v1152 = vld [vmem:[#allocation2 + $0x90] sm:$0xff]
      %v1153 = vld [vmem:[#allocation2 + $0x98] sm:$0xff]
      %v1154 = vld [vmem:[#allocation2 + $0xa0] sm:$0xff]
      %v1155 = vld [vmem:[#allocation2 + $0xa8] sm:$0xff]
      %v1156 = vld [vmem:[#allocation2 + $0xb0] sm:$0xff]
      %v1157 = vld [vmem:[#allocation2 + $0xb8] sm:$0xff]
      %v1158 = vld [vmem:[#allocation2 + $0xc0] sm:$0xff]
      %v1159 = vld [vmem:[#allocation2 + $0xc8] sm:$0xff]
      %v1160 = vld [vmem:[#allocation2 + $0xd0] sm:$0xff]
      %v1161 = vld [vmem:[#allocation2 + $0xd8] sm:$0xff]
      %v1162 = vld [vmem:[#allocation2 + $0xe0] sm:$0xff]
      %v1163 = vld [vmem:[#allocation2 + $0xe8] sm:$0xff]
      %v1164 = vld [vmem:[#allocation2 + $0xf0] sm:$0xff]
      %v1165 = vld [vmem:[#allocation2 + $0xf8] sm:$0xff]
      %v1166 = vld [vmem:[#allocation2 + $0x100] sm:$0xff]
      %v1167 = vld [vmem:[#allocation2 + $0x108] sm:$0xff]
      %v1168 = vld [vmem:[#allocation2 + $0x110] sm:$0xff]
      %v1169 = vld [vmem:[#allocation2 + $0x118] sm:$0xff]
      %v1170 = vld [vmem:[#allocation2 + $0x120] sm:$0xff]
      %v1171 = vld [vmem:[#allocation2 + $0x128] sm:$0xff]
      %v1172 = vld [vmem:[#allocation2 + $0x130] sm:$0xff]
      %v1173 = vld [vmem:[#allocation2 + $0x138] sm:$0xff]
      %v1174 = vld [vmem:[#allocation2 + $0x140] sm:$0xff]
      %v1175 = vld [vmem:[#allocation2 + $0x148] sm:$0xff]
      %v1176 = vld [vmem:[#allocation2 + $0x150] sm:$0xff]
      %v1177 = vld [vmem:[#allocation2 + $0x158] sm:$0xff]
      %v1178 = vld [vmem:[#allocation2 + $0x160] sm:$0xff]
      %v1179 = vld [vmem:[#allocation2 + $0x168] sm:$0xff]
      %v1180 = vld [vmem:[#allocation2 + $0x170] sm:$0xff]
      %v1181 = vld [vmem:[#allocation2 + $0x178] sm:$0xff]
      %v1182 = vld [vmem:[#allocation2 + $0x180] sm:$0xff]
      %v1183 = vld [vmem:[#allocation2 + $0x188] sm:$0xff]
      %v1184 = vld [vmem:[#allocation2 + $0x190] sm:$0xff]
      %v1185 = vld [vmem:[#allocation2 + $0x198] sm:$0xff]
      %v1186 = vld [vmem:[#allocation2 + $0x1a0] sm:$0xff]
      %v1187 = vld [vmem:[#allocation2 + $0x1a8] sm:$0xff]
      %v1188 = vld [vmem:[#allocation2 + $0x1b0] sm:$0xff]
      %v1189 = vld [vmem:[#allocation2 + $0x1b8] sm:$0xff]
      %v1190 = vld [vmem:[#allocation2 + $0x1c0] sm:$0xff]
      %v1191 = vld [vmem:[#allocation2 + $0x1c8] sm:$0xff]
      %v1192 = vld [vmem:[#allocation2 + $0x1d0] sm:$0xff]
      %v1193 = vld [vmem:[#allocation2 + $0x1d8] sm:$0xff]
      %v1194 = vld [vmem:[#allocation2 + $0x1e0] sm:$0xff]
      %v1195 = vld [vmem:[#allocation2 + $0x1e8] sm:$0xff]
      %v1196 = vld [vmem:[#allocation2 + $0x1f0] sm:$0xff]
      %v1197 = vld [vmem:[#allocation2 + $0x1f8] sm:$0xff]
      %v1198 = vadd.f32 %v1006, %v1007
      %1199 = vadd.xlane.f32.xlu0 %v1198
      %v1200 = vpop.xlane.xlu0 %1199
      %v1201 = vadd.f32 %v1008, %v1009
      %1202 = vadd.xlane.f32.xlu0 %v1201
      %v1203 = vpop.xlane.xlu0 %1202
      %v1204 = vadd.f32 %v1010, %v1011
      %1205 = vadd.xlane.f32.xlu0 %v1204
      %v1206 = vpop.xlane.xlu0 %1205
      %v1207 = vadd.f32 %v1012, %v1013
      %1208 = vadd.xlane.f32.xlu0 %v1207
      %v1209 = vpop.xlane.xlu0 %1208
      %v1210 = vadd.f32 %v1014, %v1015
      %1211 = vadd.xlane.f32.xlu0 %v1210
      %v1212 = vpop.xlane.xlu0 %1211
      %v1213 = vadd.f32 %v1016, %v1017
      %1214 = vadd.xlane.f32.xlu0 %v1213
      %v1215 = vpop.xlane.xlu0 %1214
      %v1216 = vadd.f32 %v1018, %v1019
      %1217 = vadd.xlane.f32.xlu0 %v1216
      %v1218 = vpop.xlane.xlu0 %1217
      %v1219 = vadd.f32 %v1020, %v1021
      %1220 = vadd.xlane.f32.xlu0 %v1219
      %v1221 = vpop.xlane.xlu0 %1220
      %v1222 = vadd.f32 %v1022, %v1023
      %1223 = vadd.xlane.f32.xlu0 %v1222
      %v1224 = vpop.xlane.xlu0 %1223
      %v1225 = vadd.f32 %v1024, %v1025
      %1226 = vadd.xlane.f32.xlu0 %v1225
      %v1227 = vpop.xlane.xlu0 %1226
      %v1228 = vadd.f32 %v1026, %v1027
      %1229 = vadd.xlane.f32.xlu0 %v1228
      %v1230 = vpop.xlane.xlu0 %1229
      %v1231 = vadd.f32 %v1028, %v1029
      %1232 = vadd.xlane.f32.xlu0 %v1231
      %v1233 = vpop.xlane.xlu0 %1232
      %v1234 = vadd.f32 %v1030, %v1031
      %1235 = vadd.xlane.f32.xlu0 %v1234
      %v1236 = vpop.xlane.xlu0 %1235
      %v1237 = vadd.f32 %v1032, %v1033
      %1238 = vadd.xlane.f32.xlu0 %v1237
      %v1239 = vpop.xlane.xlu0 %1238
      %v1240 = vadd.f32 %v1034, %v1035
      %1241 = vadd.xlane.f32.xlu0 %v1240
      %v1242 = vpop.xlane.xlu0 %1241
      %v1243 = vadd.f32 %v1036, %v1037
      %1244 = vadd.xlane.f32.xlu0 %v1243
      %v1245 = vpop.xlane.xlu0 %1244
      %v1246 = vadd.f32 %v1038, %v1039
      %1247 = vadd.xlane.f32.xlu0 %v1246
      %v1248 = vpop.xlane.xlu0 %1247
      %v1249 = vadd.f32 %v1040, %v1041
      %1250 = vadd.xlane.f32.xlu0 %v1249
      %v1251 = vpop.xlane.xlu0 %1250
      %v1252 = vadd.f32 %v1042, %v1043
      %1253 = vadd.xlane.f32.xlu0 %v1252
      %v1254 = vpop.xlane.xlu0 %1253
      %v1255 = vadd.f32 %v1044, %v1045
      %1256 = vadd.xlane.f32.xlu0 %v1255
      %v1257 = vpop.xlane.xlu0 %1256
      %v1258 = vadd.f32 %v1046, %v1047
      %1259 = vadd.xlane.f32.xlu0 %v1258
      %v1260 = vpop.xlane.xlu0 %1259
      %v1261 = vadd.f32 %v1048, %v1049
      %1262 = vadd.xlane.f32.xlu0 %v1261
      %v1263 = vpop.xlane.xlu0 %1262
      %v1264 = vadd.f32 %v1050, %v1051
      %1265 = vadd.xlane.f32.xlu0 %v1264
      %v1266 = vpop.xlane.xlu0 %1265
      %v1267 = vadd.f32 %v1052, %v1053
      %1268 = vadd.xlane.f32.xlu0 %v1267
      %v1269 = vpop.xlane.xlu0 %1268
      %v1270 = vadd.f32 %v1054, %v1055
      %1271 = vadd.xlane.f32.xlu0 %v1270
      %v1272 = vpop.xlane.xlu0 %1271
      %v1273 = vadd.f32 %v1056, %v1057
      %1274 = vadd.xlane.f32.xlu0 %v1273
      %v1275 = vpop.xlane.xlu0 %1274
      %v1276 = vadd.f32 %v1058, %v1059
      %1277 = vadd.xlane.f32.xlu0 %v1276
      %v1278 = vpop.xlane.xlu0 %1277
      %v1279 = vadd.f32 %v1060, %v1061
      %1280 = vadd.xlane.f32.xlu0 %v1279
      %v1281 = vpop.xlane.xlu0 %1280
      %v1282 = vadd.f32 %v1062, %v1063
      %1283 = vadd.xlane.f32.xlu0 %v1282
      %v1284 = vpop.xlane.xlu0 %1283
      %v1285 = vadd.f32 %v1064, %v1065
      %1286 = vadd.xlane.f32.xlu0 %v1285
      %v1287 = vpop.xlane.xlu0 %1286
      %v1288 = vadd.f32 %v1066, %v1067
      %1289 = vadd.xlane.f32.xlu0 %v1288
      %v1290 = vpop.xlane.xlu0 %1289
      %v1291 = vadd.f32 %v1068, %v1069
      %1292 = vadd.xlane.f32.xlu0 %v1291
      %v1293 = vpop.xlane.xlu0 %1292
      %v1294 = vadd.f32 %v1070, %v1071
      %1295 = vadd.xlane.f32.xlu0 %v1294
      %v1296 = vpop.xlane.xlu0 %1295
      %v1297 = vadd.f32 %v1072, %v1073
      %1298 = vadd.xlane.f32.xlu0 %v1297
      %v1299 = vpop.xlane.xlu0 %1298
      %v1300 = vadd.f32 %v1074, %v1075
      %1301 = vadd.xlane.f32.xlu0 %v1300
      %v1302 = vpop.xlane.xlu0 %1301
      %v1303 = vadd.f32 %v1076, %v1077
      %1304 = vadd.xlane.f32.xlu0 %v1303
      %v1305 = vpop.xlane.xlu0 %1304
      %v1306 = vadd.f32 %v1078, %v1079
      %1307 = vadd.xlane.f32.xlu0 %v1306
      %v1308 = vpop.xlane.xlu0 %1307
      %v1309 = vadd.f32 %v1080, %v1081
      %1310 = vadd.xlane.f32.xlu0 %v1309
      %v1311 = vpop.xlane.xlu0 %1310
      %v1312 = vadd.f32 %v1082, %v1083
      %1313 = vadd.xlane.f32.xlu0 %v1312
      %v1314 = vpop.xlane.xlu0 %1313
      %v1315 = vadd.f32 %v1084, %v1085
      %1316 = vadd.xlane.f32.xlu0 %v1315
      %v1317 = vpop.xlane.xlu0 %1316
      %v1318 = vadd.f32 %v1086, %v1087
      %1319 = vadd.xlane.f32.xlu0 %v1318
      %v1320 = vpop.xlane.xlu0 %1319
      %v1321 = vadd.f32 %v1088, %v1089
      %1322 = vadd.xlane.f32.xlu0 %v1321
      %v1323 = vpop.xlane.xlu0 %1322
      %v1324 = vadd.f32 %v1090, %v1091
      %1325 = vadd.xlane.f32.xlu0 %v1324
      %v1326 = vpop.xlane.xlu0 %1325
      %v1327 = vadd.f32 %v1092, %v1093
      %1328 = vadd.xlane.f32.xlu0 %v1327
      %v1329 = vpop.xlane.xlu0 %1328
      %v1330 = vadd.f32 %v1094, %v1095
      %1331 = vadd.xlane.f32.xlu0 %v1330
      %v1332 = vpop.xlane.xlu0 %1331
      %v1333 = vadd.f32 %v1096, %v1097
      %1334 = vadd.xlane.f32.xlu0 %v1333
      %v1335 = vpop.xlane.xlu0 %1334
      %v1336 = vadd.f32 %v1098, %v1099
      %1337 = vadd.xlane.f32.xlu0 %v1336
      %v1338 = vpop.xlane.xlu0 %1337
      %v1339 = vadd.f32 %v1100, %v1101
      %1340 = vadd.xlane.f32.xlu0 %v1339
      %v1341 = vpop.xlane.xlu0 %1340
      %v1342 = vadd.f32 %v1102, %v1103
      %1343 = vadd.xlane.f32.xlu0 %v1342
      %v1344 = vpop.xlane.xlu0 %1343
      %v1345 = vadd.f32 %v1104, %v1105
      %1346 = vadd.xlane.f32.xlu0 %v1345
      %v1347 = vpop.xlane.xlu0 %1346
      %v1348 = vadd.f32 %v1106, %v1107
      %1349 = vadd.xlane.f32.xlu0 %v1348
      %v1350 = vpop.xlane.xlu0 %1349
      %v1351 = vadd.f32 %v1108, %v1109
      %1352 = vadd.xlane.f32.xlu0 %v1351
      %v1353 = vpop.xlane.xlu0 %1352
      %v1354 = vadd.f32 %v1110, %v1111
      %1355 = vadd.xlane.f32.xlu0 %v1354
      %v1356 = vpop.xlane.xlu0 %1355
      %v1357 = vadd.f32 %v1112, %v1113
      %1358 = vadd.xlane.f32.xlu0 %v1357
      %v1359 = vpop.xlane.xlu0 %1358
      %v1360 = vadd.f32 %v1114, %v1115
      %1361 = vadd.xlane.f32.xlu0 %v1360
      %v1362 = vpop.xlane.xlu0 %1361
      %v1363 = vadd.f32 %v1116, %v1117
      %1364 = vadd.xlane.f32.xlu0 %v1363
      %v1365 = vpop.xlane.xlu0 %1364
      %v1366 = vadd.f32 %v1118, %v1119
      %1367 = vadd.xlane.f32.xlu0 %v1366
      %v1368 = vpop.xlane.xlu0 %1367
      %v1369 = vadd.f32 %v1120, %v1121
      %1370 = vadd.xlane.f32.xlu0 %v1369
      %v1371 = vpop.xlane.xlu0 %1370
      %v1372 = vadd.f32 %v1122, %v1123
      %1373 = vadd.xlane.f32.xlu0 %v1372
      %v1374 = vpop.xlane.xlu0 %1373
      %v1375 = vadd.f32 %v1124, %v1125
      %1376 = vadd.xlane.f32.xlu0 %v1375
      %v1377 = vpop.xlane.xlu0 %1376
      %v1378 = vadd.f32 %v1126, %v1127
      %1379 = vadd.xlane.f32.xlu0 %v1378
      %v1380 = vpop.xlane.xlu0 %1379
      %v1381 = vadd.f32 %v1128, %v1129
      %1382 = vadd.xlane.f32.xlu0 %v1381
      %v1383 = vpop.xlane.xlu0 %1382
      %v1384 = vadd.f32 %v1130, %v1131
      %1385 = vadd.xlane.f32.xlu0 %v1384
      %v1386 = vpop.xlane.xlu0 %1385
      %v1387 = vadd.f32 %v1132, %v1133
      %1388 = vadd.xlane.f32.xlu0 %v1387
      %v1389 = vpop.xlane.xlu0 %1388
      %v1390 = vadd.f32 %v1134, %v1200
      %v1391 = vadd.f32 %v1135, %v1203
      %v1392 = vadd.f32 %v1136, %v1206
      %v1393 = vadd.f32 %v1137, %v1209
      %v1394 = vadd.f32 %v1138, %v1212
      %v1395 = vadd.f32 %v1139, %v1215
      %v1396 = vadd.f32 %v1140, %v1218
      %v1397 = vadd.f32 %v1141, %v1221
      %v1398 = vadd.f32 %v1142, %v1224
      %v1399 = vadd.f32 %v1143, %v1227
      %v1400 = vadd.f32 %v1144, %v1230
      %v1401 = vadd.f32 %v1145, %v1233
      %v1402 = vadd.f32 %v1146, %v1236
      %v1403 = vadd.f32 %v1147, %v1239
      %v1404 = vadd.f32 %v1148, %v1242
      %v1405 = vadd.f32 %v1149, %v1245
      %v1406 = vadd.f32 %v1150, %v1248
      %v1407 = vadd.f32 %v1151, %v1251
      %v1408 = vadd.f32 %v1152, %v1254
      %v1409 = vadd.f32 %v1153, %v1257
      %v1410 = vadd.f32 %v1154, %v1260
      %v1411 = vadd.f32 %v1155, %v1263
      %v1412 = vadd.f32 %v1156, %v1266
      %v1413 = vadd.f32 %v1157, %v1269
      %v1414 = vadd.f32 %v1158, %v1272
      %v1415 = vadd.f32 %v1159, %v1275
      %v1416 = vadd.f32 %v1160, %v1278
      %v1417 = vadd.f32 %v1161, %v1281
      %v1418 = vadd.f32 %v1162, %v1284
      %v1419 = vadd.f32 %v1163, %v1287
      %v1420 = vadd.f32 %v1164, %v1290
      %v1421 = vadd.f32 %v1165, %v1293
      %v1422 = vadd.f32 %v1166, %v1296
      %v1423 = vadd.f32 %v1167, %v1299
      %v1424 = vadd.f32 %v1168, %v1302
      %v1425 = vadd.f32 %v1169, %v1305
      %v1426 = vadd.f32 %v1170, %v1308
      %v1427 = vadd.f32 %v1171, %v1311
      %v1428 = vadd.f32 %v1172, %v1314
      %v1429 = vadd.f32 %v1173, %v1317
      %v1430 = vadd.f32 %v1174, %v1320
      %v1431 = vadd.f32 %v1175, %v1323
      %v1432 = vadd.f32 %v1176, %v1326
      %v1433 = vadd.f32 %v1177, %v1329
      %v1434 = vadd.f32 %v1178, %v1332
      %v1435 = vadd.f32 %v1179, %v1335
      %v1436 = vadd.f32 %v1180, %v1338
      %v1437 = vadd.f32 %v1181, %v1341
      %v1438 = vadd.f32 %v1182, %v1344
      %v1439 = vadd.f32 %v1183, %v1347
      %v1440 = vadd.f32 %v1184, %v1350
      %v1441 = vadd.f32 %v1185, %v1353
      %v1442 = vadd.f32 %v1186, %v1356
      %v1443 = vadd.f32 %v1187, %v1359
      %v1444 = vadd.f32 %v1188, %v1362
      %v1445 = vadd.f32 %v1189, %v1365
      %v1446 = vadd.f32 %v1190, %v1368
      %v1447 = vadd.f32 %v1191, %v1371
      %v1448 = vadd.f32 %v1192, %v1374
      %v1449 = vadd.f32 %v1193, %v1377
      %v1450 = vadd.f32 %v1194, %v1380
      %v1451 = vadd.f32 %v1195, %v1383
      %v1452 = vadd.f32 %v1196, %v1386
      %v1453 = vadd.f32 %v1197, %v1389
      %vm1454 = vcmask 7168
      %1455 = vst.msk [vmem:[#allocation2] sm:$0xff] %vm1454, %v1390
      %1456 = vst.msk [vmem:[#allocation2 + $0x8] sm:$0xff] %vm1454, %v1391
      %1457 = vst.msk [vmem:[#allocation2 + $0x10] sm:$0xff] %vm1454, %v1392
      %1458 = vst.msk [vmem:[#allocation2 + $0x18] sm:$0xff] %vm1454, %v1393
      %1459 = vst.msk [vmem:[#allocation2 + $0x20] sm:$0xff] %vm1454, %v1394
      %1460 = vst.msk [vmem:[#allocation2 + $0x28] sm:$0xff] %vm1454, %v1395
      %1461 = vst.msk [vmem:[#allocation2 + $0x30] sm:$0xff] %vm1454, %v1396
      %1462 = vst.msk [vmem:[#allocation2 + $0x38] sm:$0xff] %vm1454, %v1397
      %1463 = vst.msk [vmem:[#allocation2 + $0x40] sm:$0xff] %vm1454, %v1398
      %1464 = vst.msk [vmem:[#allocation2 + $0x48] sm:$0xff] %vm1454, %v1399
      %1465 = vst.msk [vmem:[#allocation2 + $0x50] sm:$0xff] %vm1454, %v1400
      %1466 = vst.msk [vmem:[#allocation2 + $0x58] sm:$0xff] %vm1454, %v1401
      %1467 = vst.msk [vmem:[#allocation2 + $0x60] sm:$0xff] %vm1454, %v1402
      %1468 = vst.msk [vmem:[#allocation2 + $0x68] sm:$0xff] %vm1454, %v1403
      %1469 = vst.msk [vmem:[#allocation2 + $0x70] sm:$0xff] %vm1454, %v1404
      %1470 = vst.msk [vmem:[#allocation2 + $0x78] sm:$0xff] %vm1454, %v1405
      %1471 = vst.msk [vmem:[#allocation2 + $0x80] sm:$0xff] %vm1454, %v1406
      %1472 = vst.msk [vmem:[#allocation2 + $0x88] sm:$0xff] %vm1454, %v1407
      %1473 = vst.msk [vmem:[#allocation2 + $0x90] sm:$0xff] %vm1454, %v1408
      %1474 = vst.msk [vmem:[#allocation2 + $0x98] sm:$0xff] %vm1454, %v1409
      %1475 = vst.msk [vmem:[#allocation2 + $0xa0] sm:$0xff] %vm1454, %v1410
      %1476 = vst.msk [vmem:[#allocation2 + $0xa8] sm:$0xff] %vm1454, %v1411
      %1477 = vst.msk [vmem:[#allocation2 + $0xb0] sm:$0xff] %vm1454, %v1412
      %1478 = vst.msk [vmem:[#allocation2 + $0xb8] sm:$0xff] %vm1454, %v1413
      %1479 = vst.msk [vmem:[#allocation2 + $0xc0] sm:$0xff] %vm1454, %v1414
      %1480 = vst.msk [vmem:[#allocation2 + $0xc8] sm:$0xff] %vm1454, %v1415
      %1481 = vst.msk [vmem:[#allocation2 + $0xd0] sm:$0xff] %vm1454, %v1416
      %1482 = vst.msk [vmem:[#allocation2 + $0xd8] sm:$0xff] %vm1454, %v1417
      %1483 = vst.msk [vmem:[#allocation2 + $0xe0] sm:$0xff] %vm1454, %v1418
      %1484 = vst.msk [vmem:[#allocation2 + $0xe8] sm:$0xff] %vm1454, %v1419
      %1485 = vst.msk [vmem:[#allocation2 + $0xf0] sm:$0xff] %vm1454, %v1420
      %1486 = vst.msk [vmem:[#allocation2 + $0xf8] sm:$0xff] %vm1454, %v1421
      %1487 = vst.msk [vmem:[#allocation2 + $0x100] sm:$0xff] %vm1454, %v1422
      %1488 = vst.msk [vmem:[#allocation2 + $0x108] sm:$0xff] %vm1454, %v1423
      %1489 = vst.msk [vmem:[#allocation2 + $0x110] sm:$0xff] %vm1454, %v1424
      %1490 = vst.msk [vmem:[#allocation2 + $0x118] sm:$0xff] %vm1454, %v1425
      %1491 = vst.msk [vmem:[#allocation2 + $0x120] sm:$0xff] %vm1454, %v1426
      %1492 = vst.msk [vmem:[#allocation2 + $0x128] sm:$0xff] %vm1454, %v1427
      %1493 = vst.msk [vmem:[#allocation2 + $0x130] sm:$0xff] %vm1454, %v1428
      %1494 = vst.msk [vmem:[#allocation2 + $0x138] sm:$0xff] %vm1454, %v1429
      %1495 = vst.msk [vmem:[#allocation2 + $0x140] sm:$0xff] %vm1454, %v1430
      %1496 = vst.msk [vmem:[#allocation2 + $0x148] sm:$0xff] %vm1454, %v1431
      %1497 = vst.msk [vmem:[#allocation2 + $0x150] sm:$0xff] %vm1454, %v1432
      %1498 = vst.msk [vmem:[#allocation2 + $0x158] sm:$0xff] %vm1454, %v1433
      %1499 = vst.msk [vmem:[#allocation2 + $0x160] sm:$0xff] %vm1454, %v1434
      %1500 = vst.msk [vmem:[#allocation2 + $0x168] sm:$0xff] %vm1454, %v1435
      %1501 = vst.msk [vmem:[#allocation2 + $0x170] sm:$0xff] %vm1454, %v1436
      %1502 = vst.msk [vmem:[#allocation2 + $0x178] sm:$0xff] %vm1454, %v1437
      %1503 = vst.msk [vmem:[#allocation2 + $0x180] sm:$0xff] %vm1454, %v1438
      %1504 = vst.msk [vmem:[#allocation2 + $0x188] sm:$0xff] %vm1454, %v1439
      %1505 = vst.msk [vmem:[#allocation2 + $0x190] sm:$0xff] %vm1454, %v1440
      %1506 = vst.msk [vmem:[#allocation2 + $0x198] sm:$0xff] %vm1454, %v1441
      %1507 = vst.msk [vmem:[#allocation2 + $0x1a0] sm:$0xff] %vm1454, %v1442
      %1508 = vst.msk [vmem:[#allocation2 + $0x1a8] sm:$0xff] %vm1454, %v1443
      %1509 = vst.msk [vmem:[#allocation2 + $0x1b0] sm:$0xff] %vm1454, %v1444
      %1510 = vst.msk [vmem:[#allocation2 + $0x1b8] sm:$0xff] %vm1454, %v1445
      %1511 = vst.msk [vmem:[#allocation2 + $0x1c0] sm:$0xff] %vm1454, %v1446
      %1512 = vst.msk [vmem:[#allocation2 + $0x1c8] sm:$0xff] %vm1454, %v1447
      %1513 = vst.msk [vmem:[#allocation2 + $0x1d0] sm:$0xff] %vm1454, %v1448
      %1514 = vst.msk [vmem:[#allocation2 + $0x1d8] sm:$0xff] %vm1454, %v1449
      %1515 = vst.msk [vmem:[#allocation2 + $0x1e0] sm:$0xff] %vm1454, %v1450
      %1516 = vst.msk [vmem:[#allocation2 + $0x1e8] sm:$0xff] %vm1454, %v1451
      %1517 = vst.msk [vmem:[#allocation2 + $0x1f0] sm:$0xff] %vm1454, %v1452
      %1518 = vst.msk [vmem:[#allocation2 + $0x1f8] sm:$0xff] %vm1454, %v1453
      // Predicated region
      $region37: #{tpu_custom_call.1} parent=31 // pred_check
        %p1519 = pneg %p223
      $region38: #{tpu_custom_call.1} parent=31 // pred_check_branch
        %1521 = sbr.rel (%p1519) target = $region40
      $region39: #{tpu_custom_call.1} parent=31 // pred_region
        %v1522 = vld [vmem:[%s2] sm:$0xff]
        %v1523 = vld [vmem:[%s2 + $0x8] sm:$0xff]
        %v1524 = vld [vmem:[%s2 + $0x10] sm:$0xff]
        %v1525 = vld [vmem:[%s2 + $0x18] sm:$0xff]
        %v1526 = vld [vmem:[%s2 + $0x20] sm:$0x3]
        %v1527 = vld [vmem:[%s2 + $0x28] sm:$0x3]
        %v1528 = vld [vmem:[%s2 + $0x30] sm:$0x3]
        %v1529 = vld [vmem:[%s2 + $0x38] sm:$0x3]
        %v1530 = vld [vmem:[#allocation2] sm:$0xff]
        %v1531 = vld [vmem:[#allocation2 + $0x8] sm:$0xff]
        %v1532 = vld [vmem:[#allocation2 + $0x10] sm:$0xff]
        %v1533 = vld [vmem:[#allocation2 + $0x18] sm:$0xff]
        %v1534 = vld [vmem:[#allocation2 + $0x20] sm:$0xff]
        %v1535 = vld [vmem:[#allocation2 + $0x28] sm:$0xff]
        %v1536 = vld [vmem:[#allocation2 + $0x30] sm:$0xff]
        %v1537 = vld [vmem:[#allocation2 + $0x38] sm:$0xff]
        %v1538 = vld [vmem:[#allocation2 + $0x40] sm:$0xff]
        %v1539 = vld [vmem:[#allocation2 + $0x48] sm:$0xff]
        %v1540 = vld [vmem:[#allocation2 + $0x50] sm:$0xff]
        %v1541 = vld [vmem:[#allocation2 + $0x58] sm:$0xff]
        %v1542 = vld [vmem:[#allocation2 + $0x60] sm:$0xff]
        %v1543 = vld [vmem:[#allocation2 + $0x68] sm:$0xff]
        %v1544 = vld [vmem:[#allocation2 + $0x70] sm:$0xff]
        %v1545 = vld [vmem:[#allocation2 + $0x78] sm:$0xff]
        %v1546 = vld [vmem:[#allocation2 + $0x80] sm:$0xff]
        %v1547 = vld [vmem:[#allocation2 + $0x88] sm:$0xff]
        %v1548 = vld [vmem:[#allocation2 + $0x90] sm:$0xff]
        %v1549 = vld [vmem:[#allocation2 + $0x98] sm:$0xff]
        %v1550 = vld [vmem:[#allocation2 + $0xa0] sm:$0xff]
        %v1551 = vld [vmem:[#allocation2 + $0xa8] sm:$0xff]
        %v1552 = vld [vmem:[#allocation2 + $0xb0] sm:$0xff]
        %v1553 = vld [vmem:[#allocation2 + $0xb8] sm:$0xff]
        %v1554 = vld [vmem:[#allocation2 + $0xc0] sm:$0xff]
        %v1555 = vld [vmem:[#allocation2 + $0xc8] sm:$0xff]
        %v1556 = vld [vmem:[#allocation2 + $0xd0] sm:$0xff]
        %v1557 = vld [vmem:[#allocation2 + $0xd8] sm:$0xff]
        %v1558 = vld [vmem:[#allocation2 + $0xe0] sm:$0xff]
        %v1559 = vld [vmem:[#allocation2 + $0xe8] sm:$0xff]
        %v1560 = vld [vmem:[#allocation2 + $0xf0] sm:$0xff]
        %v1561 = vld [vmem:[#allocation2 + $0xf8] sm:$0xff]
        %v1562 = vld [vmem:[#allocation2 + $0x100] sm:$0xff]
        %v1563 = vld [vmem:[#allocation2 + $0x108] sm:$0xff]
        %v1564 = vld [vmem:[#allocation2 + $0x110] sm:$0xff]
        %v1565 = vld [vmem:[#allocation2 + $0x118] sm:$0xff]
        %v1566 = vld [vmem:[#allocation2 + $0x120] sm:$0xff]
        %v1567 = vld [vmem:[#allocation2 + $0x128] sm:$0xff]
        %v1568 = vld [vmem:[#allocation2 + $0x130] sm:$0xff]
        %v1569 = vld [vmem:[#allocation2 + $0x138] sm:$0xff]
        %v1570 = vld [vmem:[#allocation2 + $0x140] sm:$0xff]
        %v1571 = vld [vmem:[#allocation2 + $0x148] sm:$0xff]
        %v1572 = vld [vmem:[#allocation2 + $0x150] sm:$0xff]
        %v1573 = vld [vmem:[#allocation2 + $0x158] sm:$0xff]
        %v1574 = vld [vmem:[#allocation2 + $0x160] sm:$0xff]
        %v1575 = vld [vmem:[#allocation2 + $0x168] sm:$0xff]
        %v1576 = vld [vmem:[#allocation2 + $0x170] sm:$0xff]
        %v1577 = vld [vmem:[#allocation2 + $0x178] sm:$0xff]
        %v1578 = vld [vmem:[#allocation2 + $0x180] sm:$0xff]
        %v1579 = vld [vmem:[#allocation2 + $0x188] sm:$0xff]
        %v1580 = vld [vmem:[#allocation2 + $0x190] sm:$0xff]
        %v1581 = vld [vmem:[#allocation2 + $0x198] sm:$0xff]
        %v1582 = vld [vmem:[#allocation2 + $0x1a0] sm:$0xff]
        %v1583 = vld [vmem:[#allocation2 + $0x1a8] sm:$0xff]
        %v1584 = vld [vmem:[#allocation2 + $0x1b0] sm:$0xff]
        %v1585 = vld [vmem:[#allocation2 + $0x1b8] sm:$0xff]
        %v1586 = vld [vmem:[#allocation2 + $0x1c0] sm:$0xff]
        %v1587 = vld [vmem:[#allocation2 + $0x1c8] sm:$0xff]
        %v1588 = vld [vmem:[#allocation2 + $0x1d0] sm:$0xff]
        %v1589 = vld [vmem:[#allocation2 + $0x1d8] sm:$0xff]
        %v1590 = vld [vmem:[#allocation2 + $0x1e0] sm:$0xff]
        %v1591 = vld [vmem:[#allocation2 + $0x1e8] sm:$0xff]
        %v1592 = vld [vmem:[#allocation2 + $0x1f0] sm:$0xff]
        %v1593 = vld [vmem:[#allocation2 + $0x1f8] sm:$0xff]
        %1594 = vmatprep.subr.mxu0 0.0
        %1595 = vmatpush1.msra.mxu0 %v1530
        %1596 = vmatprep.subr.mxu0 0.0
        %1597 = vmatpush1.msra.mxu0 %v1531
        %1598 = vmatprep.subr.mxu0 0.0
        %1599 = vmatpush1.msra.mxu0 %v1532
        %1600 = vmatprep.subr.mxu0 0.0
        %1601 = vmatpush1.msra.mxu0 %v1533
        %1602 = vmatprep.subr.mxu0 0.0
        %1603 = vmatpush1.msra.mxu0 %v1534
        %1604 = vmatprep.subr.mxu0 0.0
        %1605 = vmatpush1.msra.mxu0 %v1535
        %1606 = vmatprep.subr.mxu0 0.0
        %1607 = vmatpush1.msra.mxu0 %v1536
        %1608 = vmatprep.subr.mxu0 0.0
        %1609 = vmatpush1.msra.mxu0 %v1537
        %1610 = vmatprep.subr.mxu0 0.0
        %1611 = vmatpush1.msra.mxu0 %v1538
        %1612 = vmatprep.subr.mxu0 0.0
        %1613 = vmatpush1.msra.mxu0 %v1539
        %1614 = vmatprep.subr.mxu0 0.0
        %1615 = vmatpush1.msra.mxu0 %v1540
        %1616 = vmatprep.subr.mxu0 0.0
        %1617 = vmatpush1.msra.mxu0 %v1541
        %1618 = vmatprep.subr.mxu0 0.0
        %1619 = vmatpush1.msra.mxu0 %v1542
        %1620 = vmatprep.subr.mxu0 0.0
        %1621 = vmatpush1.msra.mxu0 %v1543
        %1622 = vmatprep.subr.mxu0 0.0
        %1623 = vmatpush1.msra.mxu0 %v1544
        %1624 = vmatprep.subr.mxu0 0.0
        %1625 = vmatpush1.msra.mxu0 %v1545
        %1626 = vmatprep.subr.mxu0 0.0
        %1627 = vmatpush1.msra.mxu0 %v1546
        %1628 = vmatprep.subr.mxu0 0.0
        %1629 = vmatpush1.msra.mxu0 %v1547
        %1630 = vmatprep.subr.mxu0 0.0
        %1631 = vmatpush1.msra.mxu0 %v1548
        %1632 = vmatprep.subr.mxu0 0.0
        %1633 = vmatpush1.msra.mxu0 %v1549
        %1634 = vmatprep.subr.mxu0 0.0
        %1635 = vmatpush1.msra.mxu0 %v1550
        %1636 = vmatprep.subr.mxu0 0.0
        %1637 = vmatpush1.msra.mxu0 %v1551
        %1638 = vmatprep.subr.mxu0 0.0
        %1639 = vmatpush1.msra.mxu0 %v1552
        %1640 = vmatprep.subr.mxu0 0.0
        %1641 = vmatpush1.msra.mxu0 %v1553
        %1642 = vmatprep.subr.mxu0 0.0
        %1643 = vmatpush1.msra.mxu0 %v1554
        %1644 = vmatprep.subr.mxu0 0.0
        %1645 = vmatpush1.msra.mxu0 %v1555
        %1646 = vmatprep.subr.mxu0 0.0
        %1647 = vmatpush1.msra.mxu0 %v1556
        %1648 = vmatprep.subr.mxu0 0.0
        %1649 = vmatpush1.msra.mxu0 %v1557
        %1650 = vmatprep.subr.mxu0 0.0
        %1651 = vmatpush1.msra.mxu0 %v1558
        %1652 = vmatprep.subr.mxu0 0.0
        %1653 = vmatpush1.msra.mxu0 %v1559
        %1654 = vmatprep.subr.mxu0 0.0
        %1655 = vmatpush1.msra.mxu0 %v1560
        %1656 = vmatprep.subr.mxu0 0.0
        %1657 = vmatpush1.msra.mxu0 %v1561
        %1658 = vmatprep.mubr.f32.mxu0 %v1523
        %1659 = vmatmul.mubr.f32.gmra.mrb[0].mxu0 %v1522
        %v1660 = vpop.f32.mrb[0].mxu0
        %v1661 = vadd.f32 0.0, %v1660
        %v1662 = vpop.f32.mrb[0].mxu0
        %1663 = vmatprep.mubr.f32.mxu0 %v1527
        %1664 = vmatmul.mubr.f32.gmra.mrb[0].mxu0 %v1526
        %v1665 = vpop.f32.mrb[0].mxu0
        %v1666 = vadd.f32 0.0, %v1665
        %v1667 = vpop.f32.mrb[0].mxu0
        %1668 = vdwg.mxu0
        %1669 = vmatprep.subr.mxu0 0.0
        %1670 = vmatpush1.msra.mxu0 %v1562
        %1671 = vmatprep.subr.mxu0 0.0
        %1672 = vmatpush1.msra.mxu0 %v1563
        %1673 = vmatprep.subr.mxu0 0.0
        %1674 = vmatpush1.msra.mxu0 %v1564
        %1675 = vmatprep.subr.mxu0 0.0
        %1676 = vmatpush1.msra.mxu0 %v1565
        %1677 = vmatprep.subr.mxu0 0.0
        %1678 = vmatpush1.msra.mxu0 %v1566
        %1679 = vmatprep.subr.mxu0 0.0
        %1680 = vmatpush1.msra.mxu0 %v1567
        %1681 = vmatprep.subr.mxu0 0.0
        %1682 = vmatpush1.msra.mxu0 %v1568
        %1683 = vmatprep.subr.mxu0 0.0
        %1684 = vmatpush1.msra.mxu0 %v1569
        %1685 = vmatprep.subr.mxu0 0.0
        %1686 = vmatpush1.msra.mxu0 %v1570
        %1687 = vmatprep.subr.mxu0 0.0
        %1688 = vmatpush1.msra.mxu0 %v1571
        %1689 = vmatprep.subr.mxu0 0.0
        %1690 = vmatpush1.msra.mxu0 %v1572
        %1691 = vmatprep.subr.mxu0 0.0
        %1692 = vmatpush1.msra.mxu0 %v1573
        %1693 = vmatprep.subr.mxu0 0.0
        %1694 = vmatpush1.msra.mxu0 %v1574
        %1695 = vmatprep.subr.mxu0 0.0
        %1696 = vmatpush1.msra.mxu0 %v1575
        %1697 = vmatprep.subr.mxu0 0.0
        %1698 = vmatpush1.msra.mxu0 %v1576
        %1699 = vmatprep.subr.mxu0 0.0
        %1700 = vmatpush1.msra.mxu0 %v1577
        %1701 = vmatprep.subr.mxu0 0.0
        %1702 = vmatpush1.msra.mxu0 %v1578
        %1703 = vmatprep.subr.mxu0 0.0
        %1704 = vmatpush1.msra.mxu0 %v1579
        %1705 = vmatprep.subr.mxu0 0.0
        %1706 = vmatpush1.msra.mxu0 %v1580
        %1707 = vmatprep.subr.mxu0 0.0
        %1708 = vmatpush1.msra.mxu0 %v1581
        %1709 = vmatprep.subr.mxu0 0.0
        %1710 = vmatpush1.msra.mxu0 %v1582
        %1711 = vmatprep.subr.mxu0 0.0
        %1712 = vmatpush1.msra.mxu0 %v1583
        %1713 = vmatprep.subr.mxu0 0.0
        %1714 = vmatpush1.msra.mxu0 %v1584
        %1715 = vmatprep.subr.mxu0 0.0
        %1716 = vmatpush1.msra.mxu0 %v1585
        %1717 = vmatprep.subr.mxu0 0.0
        %1718 = vmatpush1.msra.mxu0 %v1586
        %1719 = vmatprep.subr.mxu0 0.0
        %1720 = vmatpush1.msra.mxu0 %v1587
        %1721 = vmatprep.subr.mxu0 0.0
        %1722 = vmatpush1.msra.mxu0 %v1588
        %1723 = vmatprep.subr.mxu0 0.0
        %1724 = vmatpush1.msra.mxu0 %v1589
        %1725 = vmatprep.subr.mxu0 0.0
        %1726 = vmatpush1.msra.mxu0 %v1590
        %1727 = vmatprep.subr.mxu0 0.0
        %1728 = vmatpush1.msra.mxu0 %v1591
        %1729 = vmatprep.subr.mxu0 0.0
        %1730 = vmatpush1.msra.mxu0 %v1592
        %1731 = vmatprep.subr.mxu0 0.0
        %1732 = vmatpush1.msra.mxu0 %v1593
        %1733 = vmatprep.mubr.f32.mxu0 %v1525
        %1734 = vmatmul.mubr.f32.gmra.mrb[0].mxu0 %v1524
        %v1735 = vpop.f32.mrb[0].mxu0
        %v1736 = vadd.f32 %v1661, %v1735
        %v1737 = vpop.f32.mrb[0].mxu0
        %1738 = vmatprep.mubr.f32.mxu0 %v1529
        %1739 = vmatmul.mubr.f32.gmra.mrb[0].mxu0 %v1528
        %v1740 = vpop.f32.mrb[0].mxu0
        %v1741 = vadd.f32 %v1666, %v1740
        %v1742 = vpop.f32.mrb[0].mxu0
        %1743 = vdwg.mxu0
        %1744 = vst.msk [vmem:[%s222] sm:$0xff] %vm1454, %v1736
        %vm1745 = vcmask 1024
        %1746 = vst.msk [vmem:[%s222 + $0x8] sm:$0x3] %vm1745, %v1741
      $region40: #{tpu_custom_call.1} parent=31 // pred_fallthru
        _
      %p1747 = scmp.lt.s32.totalorder %s19, 1
      %s1748 = scalar_select %p1747, %s19, 1
      %p1749 = scmp.lt.s32.totalorder %s20, 0
      %s1750 = scalar_select %p1749, %s20, 0
      %s1751 = smul.addr %s1750, 2
      %s1752 = smul.addr %s1748, 2
      %s1753 = sadd.s32 %s1751, %s1752
      %s1754 = smul.addr %s1753, 8
      %s1755 = scalar_lea.vmem %s3, %s1754
      // Predicated region
      $region41: #{tpu_custom_call.1} parent=31 // pred_check
        %p1756 = pneg %p125
      $region42: #{tpu_custom_call.1} parent=31 // pred_check_branch
        %1758 = sbr.rel (%p1756) target = $region44
      $region43: #{tpu_custom_call.1} parent=31 // pred_region
        _
      $region44: #{tpu_custom_call.1} parent=31 // pred_fallthru
        _
    $region32: #{tpu_custom_call.1} parent=5 // pred_fallthru
      _
    %p1759 = scmp.le.s32.totalorder 2, %s9
    // Predicated region
    $region45: #{tpu_custom_call.1} parent=5 // pred_check
      %p1760 = pneg %p1759
    $region46: #{tpu_custom_call.1} parent=5 // pred_check_branch
      %1762 = sbr.rel (%p1760) target = $region48
    $region47: #{tpu_custom_call.1} parent=5 // pred_region
      %s1763 = ssub.s32 %s9, 2
      // Predicated region
      $region49: #{tpu_custom_call.1} parent=47 // pred_check
        %p1764 = pneg %p131
      $region50: #{tpu_custom_call.1} parent=47 // pred_check_branch
        %1766 = sbr.rel (%p1764) target = $region52
      $region51: #{tpu_custom_call.1} parent=47 // pred_region
        %p1767 = scmp.lt.s32.totalorder %s22, 1
        %s1768 = scalar_select %p1767, %s22, 1
        %p1769 = scmp.lt.s32.totalorder %s23, 0
        %s1770 = scalar_select %p1769, %s23, 0
        %s1771 = smul.addr %s1770, 2
        %s1772 = smul.addr %s1768, 2
        %s1773 = sadd.s32 %s1771, %s1772
        %s1774 = smul.addr %s1773, 8
        %s1775 = scalar_lea.vmem %s3, %s1774
      $region52: #{tpu_custom_call.1} parent=47 // pred_fallthru
        _
    $region48: #{tpu_custom_call.1} parent=5 // pred_fallthru
      _
  $region6: #{tpu_custom_call.1} parent=0 // loop_footer
    %s13 = sadd.s32 1, %s9
  $region7: #{tpu_custom_call.1} parent=0 // loop_footer_branch
    %8 = sbr.rel target = $region3
  $region8: #{tpu_custom_call.1} parent=0 // loop_exit
    _

</llo_original>
